<compile_context>
chip_gen: v7x
topology: tpu7x:2x2x1
jax: 0.10.0
libtpu: 0.0.40
codegen_flags: <defaults>
</compile_context>

<pallas_src>
import functools

import jax
import jax.numpy as jnp
from jax import lax
from jax.experimental import pallas as pl
from jax.experimental.pallas import tpu as pltpu


# ----------------------------------------------------------------------------
# Fused Pallas kernel
# ----------------------------------------------------------------------------
def make_fused_kernel(num_layers, T):
    """Build the fused LSTM(+FC) kernel for a fixed layer count / seq length."""

    def kernel(*refs):
        # refs = x, (wih_t, whh_t, b) * num_layers, fc_w_t, fc_b, out
        x_ref = refs[0]
        layer_refs = refs[1:1 + 3 * num_layers]
        fc_w_ref = refs[1 + 3 * num_layers]
        fc_b_ref = refs[2 + 3 * num_layers]
        out_ref = refs[3 + 3 * num_layers]

        B = x_ref.shape[0]
        D0 = x_ref.shape[2]

        # Layer input as (B*T, D) rows in (b, t) order.  Leading-dim merge with
        # the minor dim unchanged -> layout-preserving, cheap in-kernel reshape.
        seq2d = x_ref[...].reshape(B * T, D0)
        flat = None

        for l in range(num_layers):
            wih = layer_refs[3 * l][...]       # (D_l, 4H)   input -> gates
            whh = layer_refs[3 * l + 1][...]   # (H,  4H)    hidden -> gates
            b = layer_refs[3 * l + 2][...]     # (1,  4H)    b_ih + b_hh
            H = whh.shape[0]

            # Batched input projection for the whole sequence: ONE MXU push of
            # shape (B*T, D) @ (D, 4H) instead of T tiny per-step matmuls on
            # the serial path.
            proj = jnp.dot(seq2d, wih, preferred_element_type=jnp.float32) + b
            proj = proj.reshape(B, T, 4 * H)   # leading-dim split, minor dim kept

            h = jnp.zeros((B, H), jnp.float32)
            c = jnp.zeros((B, H), jnp.float32)
            hs = []
            # Static unroll (T is small); only h @ Whh is serially dependent.
            for t in range(T):
                gates = proj[:, t, :] + jnp.dot(
                    h, whh, preferred_element_type=jnp.float32)   # (B, 4H)
                # PyTorch gate order [i, f, g, o].
                i = jax.nn.sigmoid(gates[:, 0 * H:1 * H])
                f = jax.nn.sigmoid(gates[:, 1 * H:2 * H])
                g = jnp.tanh(gates[:, 2 * H:3 * H])
                o = jax.nn.sigmoid(gates[:, 3 * H:4 * H])
                c = f * c + i * g
                h = o * jnp.tanh(c)
                hs.append(h)

            if l + 1 < num_layers:
                # Next layer's (B*T, H) input rows, still in (b, t) order.
                seq2d = jnp.stack(hs, axis=1).reshape(B * T, H)
            else:
                # PyTorch batch-first flatten order: flat[b, t*H + h_idx].
                flat = jnp.concatenate(hs, axis=1)                # (B, T*H)

        # Final FC, fused in the same kernel, fed straight from VMEM values.
        out = (jnp.dot(flat, fc_w_ref[...], preferred_element_type=jnp.float32)
               + fc_b_ref[...])
        out_ref[...] = out.astype(out_ref.dtype)

    return kernel


# ----------------------------------------------------------------------------
# Wrapper
# ----------------------------------------------------------------------------
def trajectory_predictor_forward(x_btd, params, output_seq_len):
    """x_btd: (B, T, 2)  ->  (B, output_seq_len, 2).  Single fused pallas_call."""
    B, T, _ = x_btd.shape
    num_layers = len(params["lstm"])
    out_dim = params["fc_w_t"].shape[1]

    args = [x_btd]
    for layer in params["lstm"]:
        args += [layer["wih_t"], layer["whh_t"], layer["b"]]
    args += [params["fc_w_t"], params["fc_b"]]

    # Grid-less call with whole-array (default) specs: everything fits easily
    # in VMEM on v5e/v6e/v7x, so the kernel runs as one invocation with all
    # weights resident and zero pipeline/grid-step overhead.
    y = pl.pallas_call(
        make_fused_kernel(num_layers, T),
        out_shape=jax.ShapeDtypeStruct((B, out_dim), jnp.float32),
    )(*args)
    return y.reshape(B, output_seq_len, 2)


# ----------------------------------------------------------------------------
# Deterministic parameter construction (matches nn.LSTM / nn.Linear shapes)
# ----------------------------------------------------------------------------
def init_params(key, hidden_size, num_layers, input_seq_len, output_seq_len):
    H = hidden_size
    scale = 1.0 / jnp.sqrt(H)
    params = {"lstm": []}
    for layer in range(num_layers):
        d_in = 2 if layer == 0 else H
        key, k1, k2, k3, k4 = jax.random.split(key, 5)
        w_ih = jax.random.uniform(k1, (4 * H, d_in), jnp.float32, -scale, scale)
        w_hh = jax.random.uniform(k2, (4 * H, H), jnp.float32, -scale, scale)
        b_ih = jax.random.uniform(k3, (4 * H,), jnp.float32, -scale, scale)
        b_hh = jax.random.uniform(k4, (4 * H,), jnp.float32, -scale, scale)
        params["lstm"].append({
            "wih_t": w_ih.T,                       # (d_in, 4H)
            "whh_t": w_hh.T,                       # (H, 4H)
            "b": (b_ih + b_hh).reshape(1, 4 * H),  # (1, 4H)
        })
    key, k5, k6 = jax.random.split(key, 3)
    in_f = H * input_seq_len
    out_f = output_seq_len * 2
    fscale = 1.0 / jnp.sqrt(in_f)
    fc_w = jax.random.uniform(k5, (out_f, in_f), jnp.float32, -fscale, fscale)
    fc_b = jax.random.uniform(k6, (out_f,), jnp.float32, -fscale, fscale)
    params["fc_w_t"] = fc_w.T                      # (in_f, out_f)
    params["fc_b"] = fc_b.reshape(1, out_f)
    return params


# ----------------------------------------------------------------------------
# Pure-JAX reference (for sanity check)
# ----------------------------------------------------------------------------
def reference_forward(x_btd, params, output_seq_len):
    B, T, _ = x_btd.shape
    h_seq = jnp.transpose(x_btd, (1, 0, 2))
    for layer in params["lstm"]:
        H = layer["whh_t"].shape[0]
        wih_t, whh_t, b = layer["wih_t"], layer["whh_t"], layer["b"]

        def step(carry, x_t):
            h, c = carry
            gates = x_t @ wih_t + h @ whh_t + b
            i = jax.nn.sigmoid(gates[:, 0 * H:1 * H])
            f = jax.nn.sigmoid(gates[:, 1 * H:2 * H])
            g = jnp.tanh(gates[:, 2 * H:3 * H])
            o = jax.nn.sigmoid(gates[:, 3 * H:4 * H])
            c = f * c + i * g
            h = o * jnp.tanh(c)
            return (h, c), h

        init = (jnp.zeros((B, H), jnp.float32), jnp.zeros((B, H), jnp.float32))
        _, h_seq = lax.scan(step, init, h_seq)
    flat = jnp.transpose(h_seq, (1, 0, 2)).reshape(B, -1)
    y = flat @ params["fc_w_t"] + params["fc_b"]
    return y.reshape(B, output_seq_len, 2)


# ----------------------------------------------------------------------------
if __name__ == "__main__":
    hidden_size = 32
    num_layers = 2
    input_seq_len = 8
    output_seq_len = 4
    batch = 2

    key = jax.random.PRNGKey(0)
    key, kx = jax.random.split(key)
    x = jax.random.normal(kx, (batch, input_seq_len, 2), jnp.float32)

    params = init_params(key, hidden_size, num_layers, input_seq_len,
                         output_seq_len)

    fwd = jax.jit(functools.partial(trajectory_predictor_forward,
                                    output_seq_len=output_seq_len))
    out = fwd(x, params)
    out = jax.block_until_ready(out)
    assert out.shape == (batch, output_seq_len, 2), out.shape

    ref = reference_forward(x, params, output_seq_len)
    assert jnp.allclose(out, ref, atol=1e-4, rtol=1e-4), (
        float(jnp.max(jnp.abs(out - ref))))

    print("KERNEL_OK")
</pallas_src>

<mosaic_0001>
module attributes {stable_mosaic.version = 11 : i64} {
  func.func @kernel(%arg0: memref<2x8x2xf32, #tpu.memory_space<vmem>>, %arg1: memref<2x128xf32, #tpu.memory_space<vmem>>, %arg2: memref<32x128xf32, #tpu.memory_space<vmem>>, %arg3: memref<1x128xf32, #tpu.memory_space<vmem>>, %arg4: memref<32x128xf32, #tpu.memory_space<vmem>>, %arg5: memref<32x128xf32, #tpu.memory_space<vmem>>, %arg6: memref<1x128xf32, #tpu.memory_space<vmem>>, %arg7: memref<256x8xf32, #tpu.memory_space<vmem>>, %arg8: memref<1x8xf32, #tpu.memory_space<vmem>>, %arg9: memref<2x8xf32, #tpu.memory_space<vmem>>) attributes {dimension_semantics = [], scalar_prefetch = 0 : i64, scratch_operands = 0 : i64, tpu.core_type = #tpu.core_type<tc>} {
    %c0 = arith.constant 0 : index
    %c0_0 = arith.constant 0 : index
    %c0_1 = arith.constant 0 : index
    %0 = vector.load %arg0[%c0, %c0_0, %c0_1] : memref<2x8x2xf32, #tpu.memory_space<vmem>>, vector<2x8x2xf32>
    %1 = vector.shape_cast %0 : vector<2x8x2xf32> to vector<16x2xf32>
    %c0_2 = arith.constant 0 : index
    %c0_3 = arith.constant 0 : index
    %2 = vector.load %arg1[%c0_2, %c0_3] : memref<2x128xf32, #tpu.memory_space<vmem>>, vector<2x128xf32>
    %c0_4 = arith.constant 0 : index
    %c0_5 = arith.constant 0 : index
    %3 = vector.load %arg2[%c0_4, %c0_5] : memref<32x128xf32, #tpu.memory_space<vmem>>, vector<32x128xf32>
    %c0_6 = arith.constant 0 : index
    %c0_7 = arith.constant 0 : index
    %4 = vector.load %arg3[%c0_6, %c0_7] : memref<1x128xf32, #tpu.memory_space<vmem>>, vector<1x128xf32>
    %cst = arith.constant dense<0.000000e+00> : vector<16x128xf32>
    %5 = tpu.matmul %1, %2, %cst {dimension_numbers = #tpu.dot_dimension_numbers<[1], [0], [0], [1], [0, 0, 1, 1], [], []>} : vector<16x2xf32>, vector<2x128xf32>, vector<16x128xf32> -> vector<16x128xf32>
    %6 = vector.broadcast %4 : vector<1x128xf32> to vector<16x128xf32>
    %7 = arith.addf %5, %6 : vector<16x128xf32>
    %8 = vector.shape_cast %7 : vector<16x128xf32> to vector<2x8x128xf32>
    %cst_8 = arith.constant 0.000000e+00 : f32
    %9 = vector.broadcast %cst_8 : f32 to vector<2x32xf32>
    %cst_9 = arith.constant 0.000000e+00 : f32
    %10 = vector.broadcast %cst_9 : f32 to vector<2x32xf32>
    %11 = vector.extract_strided_slice %8 {offsets = [0, 0, 0], sizes = [2, 1, 128], strides = [1, 1, 1]} : vector<2x8x128xf32> to vector<2x1x128xf32>
    %12 = vector.shape_cast %11 : vector<2x1x128xf32> to vector<2x128xf32>
    %cst_10 = arith.constant dense<0.000000e+00> : vector<2x128xf32>
    %13 = tpu.matmul %9, %3, %cst_10 {dimension_numbers = #tpu.dot_dimension_numbers<[1], [0], [0], [1], [0, 0, 1, 1], [], []>} : vector<2x32xf32>, vector<32x128xf32>, vector<2x128xf32> -> vector<2x128xf32>
    %14 = arith.addf %12, %13 : vector<2x128xf32>
    %15 = vector.extract_strided_slice %14 {offsets = [0, 0], sizes = [2, 32], strides = [1, 1]} : vector<2x128xf32> to vector<2x32xf32>
    %16 = arith.negf %15 : vector<2x32xf32>
    %17 = math.exp %16 : vector<2x32xf32>
    %cst_11 = arith.constant 1.000000e+00 : f32
    %18 = vector.broadcast %cst_11 : f32 to vector<2x32xf32>
    %19 = arith.addf %18, %17 : vector<2x32xf32>
    %20 = arith.divf %18, %19 : vector<2x32xf32>
    %21 = vector.extract_strided_slice %14 {offsets = [0, 32], sizes = [2, 32], strides = [1, 1]} : vector<2x128xf32> to vector<2x32xf32>
    %22 = arith.negf %21 : vector<2x32xf32>
    %23 = math.exp %22 : vector<2x32xf32>
    %cst_12 = arith.constant 1.000000e+00 : f32
    %24 = vector.broadcast %cst_12 : f32 to vector<2x32xf32>
    %25 = arith.addf %24, %23 : vector<2x32xf32>
    %26 = arith.divf %24, %25 : vector<2x32xf32>
    %27 = vector.extract_strided_slice %14 {offsets = [0, 64], sizes = [2, 32], strides = [1, 1]} : vector<2x128xf32> to vector<2x32xf32>
    %28 = math.tanh %27 : vector<2x32xf32>
    %29 = vector.extract_strided_slice %14 {offsets = [0, 96], sizes = [2, 32], strides = [1, 1]} : vector<2x128xf32> to vector<2x32xf32>
    %30 = arith.negf %29 : vector<2x32xf32>
    %31 = math.exp %30 : vector<2x32xf32>
    %cst_13 = arith.constant 1.000000e+00 : f32
    %32 = vector.broadcast %cst_13 : f32 to vector<2x32xf32>
    %33 = arith.addf %32, %31 : vector<2x32xf32>
    %34 = arith.divf %32, %33 : vector<2x32xf32>
    %35 = arith.mulf %26, %10 : vector<2x32xf32>
    %36 = arith.mulf %20, %28 : vector<2x32xf32>
    %37 = arith.addf %35, %36 : vector<2x32xf32>
    %38 = math.tanh %37 : vector<2x32xf32>
    %39 = arith.mulf %34, %38 : vector<2x32xf32>
    %40 = vector.extract_strided_slice %8 {offsets = [0, 1, 0], sizes = [2, 1, 128], strides = [1, 1, 1]} : vector<2x8x128xf32> to vector<2x1x128xf32>
    %41 = vector.shape_cast %40 : vector<2x1x128xf32> to vector<2x128xf32>
    %cst_14 = arith.constant dense<0.000000e+00> : vector<2x128xf32>
    %42 = tpu.matmul %39, %3, %cst_14 {dimension_numbers = #tpu.dot_dimension_numbers<[1], [0], [0], [1], [0, 0, 1, 1], [], []>} : vector<2x32xf32>, vector<32x128xf32>, vector<2x128xf32> -> vector<2x128xf32>
    %43 = arith.addf %41, %42 : vector<2x128xf32>
    %44 = vector.extract_strided_slice %43 {offsets = [0, 0], sizes = [2, 32], strides = [1, 1]} : vector<2x128xf32> to vector<2x32xf32>
    %45 = arith.negf %44 : vector<2x32xf32>
    %46 = math.exp %45 : vector<2x32xf32>
    %cst_15 = arith.constant 1.000000e+00 : f32
    %47 = vector.broadcast %cst_15 : f32 to vector<2x32xf32>
    %48 = arith.addf %47, %46 : vector<2x32xf32>
    %49 = arith.divf %47, %48 : vector<2x32xf32>
    %50 = vector.extract_strided_slice %43 {offsets = [0, 32], sizes = [2, 32], strides = [1, 1]} : vector<2x128xf32> to vector<2x32xf32>
    %51 = arith.negf %50 : vector<2x32xf32>
    %52 = math.exp %51 : vector<2x32xf32>
    %cst_16 = arith.constant 1.000000e+00 : f32
    %53 = vector.broadcast %cst_16 : f32 to vector<2x32xf32>
    %54 = arith.addf %53, %52 : vector<2x32xf32>
    %55 = arith.divf %53, %54 : vector<2x32xf32>
    %56 = vector.extract_strided_slice %43 {offsets = [0, 64], sizes = [2, 32], strides = [1, 1]} : vector<2x128xf32> to vector<2x32xf32>
    %57 = math.tanh %56 : vector<2x32xf32>
    %58 = vector.extract_strided_slice %43 {offsets = [0, 96], sizes = [2, 32], strides = [1, 1]} : vector<2x128xf32> to vector<2x32xf32>
    %59 = arith.negf %58 : vector<2x32xf32>
    %60 = math.exp %59 : vector<2x32xf32>
    %cst_17 = arith.constant 1.000000e+00 : f32
    %61 = vector.broadcast %cst_17 : f32 to vector<2x32xf32>
    %62 = arith.addf %61, %60 : vector<2x32xf32>
    %63 = arith.divf %61, %62 : vector<2x32xf32>
    %64 = arith.mulf %55, %37 : vector<2x32xf32>
    %65 = arith.mulf %49, %57 : vector<2x32xf32>
    %66 = arith.addf %64, %65 : vector<2x32xf32>
    %67 = math.tanh %66 : vector<2x32xf32>
    %68 = arith.mulf %63, %67 : vector<2x32xf32>
    %69 = vector.extract_strided_slice %8 {offsets = [0, 2, 0], sizes = [2, 1, 128], strides = [1, 1, 1]} : vector<2x8x128xf32> to vector<2x1x128xf32>
    %70 = vector.shape_cast %69 : vector<2x1x128xf32> to vector<2x128xf32>
    %cst_18 = arith.constant dense<0.000000e+00> : vector<2x128xf32>
    %71 = tpu.matmul %68, %3, %cst_18 {dimension_numbers = #tpu.dot_dimension_numbers<[1], [0], [0], [1], [0, 0, 1, 1], [], []>} : vector<2x32xf32>, vector<32x128xf32>, vector<2x128xf32> -> vector<2x128xf32>
    %72 = arith.addf %70, %71 : vector<2x128xf32>
    %73 = vector.extract_strided_slice %72 {offsets = [0, 0], sizes = [2, 32], strides = [1, 1]} : vector<2x128xf32> to vector<2x32xf32>
    %74 = arith.negf %73 : vector<2x32xf32>
    %75 = math.exp %74 : vector<2x32xf32>
    %cst_19 = arith.constant 1.000000e+00 : f32
    %76 = vector.broadcast %cst_19 : f32 to vector<2x32xf32>
    %77 = arith.addf %76, %75 : vector<2x32xf32>
    %78 = arith.divf %76, %77 : vector<2x32xf32>
    %79 = vector.extract_strided_slice %72 {offsets = [0, 32], sizes = [2, 32], strides = [1, 1]} : vector<2x128xf32> to vector<2x32xf32>
    %80 = arith.negf %79 : vector<2x32xf32>
    %81 = math.exp %80 : vector<2x32xf32>
    %cst_20 = arith.constant 1.000000e+00 : f32
    %82 = vector.broadcast %cst_20 : f32 to vector<2x32xf32>
    %83 = arith.addf %82, %81 : vector<2x32xf32>
    %84 = arith.divf %82, %83 : vector<2x32xf32>
    %85 = vector.extract_strided_slice %72 {offsets = [0, 64], sizes = [2, 32], strides = [1, 1]} : vector<2x128xf32> to vector<2x32xf32>
    %86 = math.tanh %85 : vector<2x32xf32>
    %87 = vector.extract_strided_slice %72 {offsets = [0, 96], sizes = [2, 32], strides = [1, 1]} : vector<2x128xf32> to vector<2x32xf32>
    %88 = arith.negf %87 : vector<2x32xf32>
    %89 = math.exp %88 : vector<2x32xf32>
    %cst_21 = arith.constant 1.000000e+00 : f32
    %90 = vector.broadcast %cst_21 : f32 to vector<2x32xf32>
    %91 = arith.addf %90, %89 : vector<2x32xf32>
    %92 = arith.divf %90, %91 : vector<2x32xf32>
    %93 = arith.mulf %84, %66 : vector<2x32xf32>
    %94 = arith.mulf %78, %86 : vector<2x32xf32>
    %95 = arith.addf %93, %94 : vector<2x32xf32>
    %96 = math.tanh %95 : vector<2x32xf32>
    %97 = arith.mulf %92, %96 : vector<2x32xf32>
    %98 = vector.extract_strided_slice %8 {offsets = [0, 3, 0], sizes = [2, 1, 128], strides = [1, 1, 1]} : vector<2x8x128xf32> to vector<2x1x128xf32>
    %99 = vector.shape_cast %98 : vector<2x1x128xf32> to vector<2x128xf32>
    %cst_22 = arith.constant dense<0.000000e+00> : vector<2x128xf32>
    %100 = tpu.matmul %97, %3, %cst_22 {dimension_numbers = #tpu.dot_dimension_numbers<[1], [0], [0], [1], [0, 0, 1, 1], [], []>} : vector<2x32xf32>, vector<32x128xf32>, vector<2x128xf32> -> vector<2x128xf32>
    %101 = arith.addf %99, %100 : vector<2x128xf32>
    %102 = vector.extract_strided_slice %101 {offsets = [0, 0], sizes = [2, 32], strides = [1, 1]} : vector<2x128xf32> to vector<2x32xf32>
    %103 = arith.negf %102 : vector<2x32xf32>
    %104 = math.exp %103 : vector<2x32xf32>
    %cst_23 = arith.constant 1.000000e+00 : f32
    %105 = vector.broadcast %cst_23 : f32 to vector<2x32xf32>
    %106 = arith.addf %105, %104 : vector<2x32xf32>
    %107 = arith.divf %105, %106 : vector<2x32xf32>
    %108 = vector.extract_strided_slice %101 {offsets = [0, 32], sizes = [2, 32], strides = [1, 1]} : vector<2x128xf32> to vector<2x32xf32>
    %109 = arith.negf %108 : vector<2x32xf32>
    %110 = math.exp %109 : vector<2x32xf32>
    %cst_24 = arith.constant 1.000000e+00 : f32
    %111 = vector.broadcast %cst_24 : f32 to vector<2x32xf32>
    %112 = arith.addf %111, %110 : vector<2x32xf32>
    %113 = arith.divf %111, %112 : vector<2x32xf32>
    %114 = vector.extract_strided_slice %101 {offsets = [0, 64], sizes = [2, 32], strides = [1, 1]} : vector<2x128xf32> to vector<2x32xf32>
    %115 = math.tanh %114 : vector<2x32xf32>
    %116 = vector.extract_strided_slice %101 {offsets = [0, 96], sizes = [2, 32], strides = [1, 1]} : vector<2x128xf32> to vector<2x32xf32>
    %117 = arith.negf %116 : vector<2x32xf32>
    %118 = math.exp %117 : vector<2x32xf32>
    %cst_25 = arith.constant 1.000000e+00 : f32
    %119 = vector.broadcast %cst_25 : f32 to vector<2x32xf32>
    %120 = arith.addf %119, %118 : vector<2x32xf32>
    %121 = arith.divf %119, %120 : vector<2x32xf32>
    %122 = arith.mulf %113, %95 : vector<2x32xf32>
    %123 = arith.mulf %107, %115 : vector<2x32xf32>
    %124 = arith.addf %122, %123 : vector<2x32xf32>
    %125 = math.tanh %124 : vector<2x32xf32>
    %126 = arith.mulf %121, %125 : vector<2x32xf32>
    %127 = vector.extract_strided_slice %8 {offsets = [0, 4, 0], sizes = [2, 1, 128], strides = [1, 1, 1]} : vector<2x8x128xf32> to vector<2x1x128xf32>
    %128 = vector.shape_cast %127 : vector<2x1x128xf32> to vector<2x128xf32>
    %cst_26 = arith.constant dense<0.000000e+00> : vector<2x128xf32>
    %129 = tpu.matmul %126, %3, %cst_26 {dimension_numbers = #tpu.dot_dimension_numbers<[1], [0], [0], [1], [0, 0, 1, 1], [], []>} : vector<2x32xf32>, vector<32x128xf32>, vector<2x128xf32> -> vector<2x128xf32>
    %130 = arith.addf %128, %129 : vector<2x128xf32>
    %131 = vector.extract_strided_slice %130 {offsets = [0, 0], sizes = [2, 32], strides = [1, 1]} : vector<2x128xf32> to vector<2x32xf32>
    %132 = arith.negf %131 : vector<2x32xf32>
    %133 = math.exp %132 : vector<2x32xf32>
    %cst_27 = arith.constant 1.000000e+00 : f32
    %134 = vector.broadcast %cst_27 : f32 to vector<2x32xf32>
    %135 = arith.addf %134, %133 : vector<2x32xf32>
    %136 = arith.divf %134, %135 : vector<2x32xf32>
    %137 = vector.extract_strided_slice %130 {offsets = [0, 32], sizes = [2, 32], strides = [1, 1]} : vector<2x128xf32> to vector<2x32xf32>
    %138 = arith.negf %137 : vector<2x32xf32>
    %139 = math.exp %138 : vector<2x32xf32>
    %cst_28 = arith.constant 1.000000e+00 : f32
    %140 = vector.broadcast %cst_28 : f32 to vector<2x32xf32>
    %141 = arith.addf %140, %139 : vector<2x32xf32>
    %142 = arith.divf %140, %141 : vector<2x32xf32>
    %143 = vector.extract_strided_slice %130 {offsets = [0, 64], sizes = [2, 32], strides = [1, 1]} : vector<2x128xf32> to vector<2x32xf32>
    %144 = math.tanh %143 : vector<2x32xf32>
    %145 = vector.extract_strided_slice %130 {offsets = [0, 96], sizes = [2, 32], strides = [1, 1]} : vector<2x128xf32> to vector<2x32xf32>
    %146 = arith.negf %145 : vector<2x32xf32>
    %147 = math.exp %146 : vector<2x32xf32>
    %cst_29 = arith.constant 1.000000e+00 : f32
    %148 = vector.broadcast %cst_29 : f32 to vector<2x32xf32>
    %149 = arith.addf %148, %147 : vector<2x32xf32>
    %150 = arith.divf %148, %149 : vector<2x32xf32>
    %151 = arith.mulf %142, %124 : vector<2x32xf32>
    %152 = arith.mulf %136, %144 : vector<2x32xf32>
    %153 = arith.addf %151, %152 : vector<2x32xf32>
    %154 = math.tanh %153 : vector<2x32xf32>
    %155 = arith.mulf %150, %154 : vector<2x32xf32>
    %156 = vector.extract_strided_slice %8 {offsets = [0, 5, 0], sizes = [2, 1, 128], strides = [1, 1, 1]} : vector<2x8x128xf32> to vector<2x1x128xf32>
    %157 = vector.shape_cast %156 : vector<2x1x128xf32> to vector<2x128xf32>
    %cst_30 = arith.constant dense<0.000000e+00> : vector<2x128xf32>
    %158 = tpu.matmul %155, %3, %cst_30 {dimension_numbers = #tpu.dot_dimension_numbers<[1], [0], [0], [1], [0, 0, 1, 1], [], []>} : vector<2x32xf32>, vector<32x128xf32>, vector<2x128xf32> -> vector<2x128xf32>
    %159 = arith.addf %157, %158 : vector<2x128xf32>
    %160 = vector.extract_strided_slice %159 {offsets = [0, 0], sizes = [2, 32], strides = [1, 1]} : vector<2x128xf32> to vector<2x32xf32>
    %161 = arith.negf %160 : vector<2x32xf32>
    %162 = math.exp %161 : vector<2x32xf32>
    %cst_31 = arith.constant 1.000000e+00 : f32
    %163 = vector.broadcast %cst_31 : f32 to vector<2x32xf32>
    %164 = arith.addf %163, %162 : vector<2x32xf32>
    %165 = arith.divf %163, %164 : vector<2x32xf32>
    %166 = vector.extract_strided_slice %159 {offsets = [0, 32], sizes = [2, 32], strides = [1, 1]} : vector<2x128xf32> to vector<2x32xf32>
    %167 = arith.negf %166 : vector<2x32xf32>
    %168 = math.exp %167 : vector<2x32xf32>
    %cst_32 = arith.constant 1.000000e+00 : f32
    %169 = vector.broadcast %cst_32 : f32 to vector<2x32xf32>
    %170 = arith.addf %169, %168 : vector<2x32xf32>
    %171 = arith.divf %169, %170 : vector<2x32xf32>
    %172 = vector.extract_strided_slice %159 {offsets = [0, 64], sizes = [2, 32], strides = [1, 1]} : vector<2x128xf32> to vector<2x32xf32>
    %173 = math.tanh %172 : vector<2x32xf32>
    %174 = vector.extract_strided_slice %159 {offsets = [0, 96], sizes = [2, 32], strides = [1, 1]} : vector<2x128xf32> to vector<2x32xf32>
    %175 = arith.negf %174 : vector<2x32xf32>
    %176 = math.exp %175 : vector<2x32xf32>
    %cst_33 = arith.constant 1.000000e+00 : f32
    %177 = vector.broadcast %cst_33 : f32 to vector<2x32xf32>
    %178 = arith.addf %177, %176 : vector<2x32xf32>
    %179 = arith.divf %177, %178 : vector<2x32xf32>
    %180 = arith.mulf %171, %153 : vector<2x32xf32>
    %181 = arith.mulf %165, %173 : vector<2x32xf32>
    %182 = arith.addf %180, %181 : vector<2x32xf32>
    %183 = math.tanh %182 : vector<2x32xf32>
    %184 = arith.mulf %179, %183 : vector<2x32xf32>
    %185 = vector.extract_strided_slice %8 {offsets = [0, 6, 0], sizes = [2, 1, 128], strides = [1, 1, 1]} : vector<2x8x128xf32> to vector<2x1x128xf32>
    %186 = vector.shape_cast %185 : vector<2x1x128xf32> to vector<2x128xf32>
    %cst_34 = arith.constant dense<0.000000e+00> : vector<2x128xf32>
    %187 = tpu.matmul %184, %3, %cst_34 {dimension_numbers = #tpu.dot_dimension_numbers<[1], [0], [0], [1], [0, 0, 1, 1], [], []>} : vector<2x32xf32>, vector<32x128xf32>, vector<2x128xf32> -> vector<2x128xf32>
    %188 = arith.addf %186, %187 : vector<2x128xf32>
    %189 = vector.extract_strided_slice %188 {offsets = [0, 0], sizes = [2, 32], strides = [1, 1]} : vector<2x128xf32> to vector<2x32xf32>
    %190 = arith.negf %189 : vector<2x32xf32>
    %191 = math.exp %190 : vector<2x32xf32>
    %cst_35 = arith.constant 1.000000e+00 : f32
    %192 = vector.broadcast %cst_35 : f32 to vector<2x32xf32>
    %193 = arith.addf %192, %191 : vector<2x32xf32>
    %194 = arith.divf %192, %193 : vector<2x32xf32>
    %195 = vector.extract_strided_slice %188 {offsets = [0, 32], sizes = [2, 32], strides = [1, 1]} : vector<2x128xf32> to vector<2x32xf32>
    %196 = arith.negf %195 : vector<2x32xf32>
    %197 = math.exp %196 : vector<2x32xf32>
    %cst_36 = arith.constant 1.000000e+00 : f32
    %198 = vector.broadcast %cst_36 : f32 to vector<2x32xf32>
    %199 = arith.addf %198, %197 : vector<2x32xf32>
    %200 = arith.divf %198, %199 : vector<2x32xf32>
    %201 = vector.extract_strided_slice %188 {offsets = [0, 64], sizes = [2, 32], strides = [1, 1]} : vector<2x128xf32> to vector<2x32xf32>
    %202 = math.tanh %201 : vector<2x32xf32>
    %203 = vector.extract_strided_slice %188 {offsets = [0, 96], sizes = [2, 32], strides = [1, 1]} : vector<2x128xf32> to vector<2x32xf32>
    %204 = arith.negf %203 : vector<2x32xf32>
    %205 = math.exp %204 : vector<2x32xf32>
    %cst_37 = arith.constant 1.000000e+00 : f32
    %206 = vector.broadcast %cst_37 : f32 to vector<2x32xf32>
    %207 = arith.addf %206, %205 : vector<2x32xf32>
    %208 = arith.divf %206, %207 : vector<2x32xf32>
    %209 = arith.mulf %200, %182 : vector<2x32xf32>
    %210 = arith.mulf %194, %202 : vector<2x32xf32>
    %211 = arith.addf %209, %210 : vector<2x32xf32>
    %212 = math.tanh %211 : vector<2x32xf32>
    %213 = arith.mulf %208, %212 : vector<2x32xf32>
    %214 = vector.extract_strided_slice %8 {offsets = [0, 7, 0], sizes = [2, 1, 128], strides = [1, 1, 1]} : vector<2x8x128xf32> to vector<2x1x128xf32>
    %215 = vector.shape_cast %214 : vector<2x1x128xf32> to vector<2x128xf32>
    %cst_38 = arith.constant dense<0.000000e+00> : vector<2x128xf32>
    %216 = tpu.matmul %213, %3, %cst_38 {dimension_numbers = #tpu.dot_dimension_numbers<[1], [0], [0], [1], [0, 0, 1, 1], [], []>} : vector<2x32xf32>, vector<32x128xf32>, vector<2x128xf32> -> vector<2x128xf32>
    %217 = arith.addf %215, %216 : vector<2x128xf32>
    %218 = vector.extract_strided_slice %217 {offsets = [0, 0], sizes = [2, 32], strides = [1, 1]} : vector<2x128xf32> to vector<2x32xf32>
    %219 = arith.negf %218 : vector<2x32xf32>
    %220 = math.exp %219 : vector<2x32xf32>
    %cst_39 = arith.constant 1.000000e+00 : f32
    %221 = vector.broadcast %cst_39 : f32 to vector<2x32xf32>
    %222 = arith.addf %221, %220 : vector<2x32xf32>
    %223 = arith.divf %221, %222 : vector<2x32xf32>
    %224 = vector.extract_strided_slice %217 {offsets = [0, 32], sizes = [2, 32], strides = [1, 1]} : vector<2x128xf32> to vector<2x32xf32>
    %225 = arith.negf %224 : vector<2x32xf32>
    %226 = math.exp %225 : vector<2x32xf32>
    %cst_40 = arith.constant 1.000000e+00 : f32
    %227 = vector.broadcast %cst_40 : f32 to vector<2x32xf32>
    %228 = arith.addf %227, %226 : vector<2x32xf32>
    %229 = arith.divf %227, %228 : vector<2x32xf32>
    %230 = vector.extract_strided_slice %217 {offsets = [0, 64], sizes = [2, 32], strides = [1, 1]} : vector<2x128xf32> to vector<2x32xf32>
    %231 = math.tanh %230 : vector<2x32xf32>
    %232 = vector.extract_strided_slice %217 {offsets = [0, 96], sizes = [2, 32], strides = [1, 1]} : vector<2x128xf32> to vector<2x32xf32>
    %233 = arith.negf %232 : vector<2x32xf32>
    %234 = math.exp %233 : vector<2x32xf32>
    %cst_41 = arith.constant 1.000000e+00 : f32
    %235 = vector.broadcast %cst_41 : f32 to vector<2x32xf32>
    %236 = arith.addf %235, %234 : vector<2x32xf32>
    %237 = arith.divf %235, %236 : vector<2x32xf32>
    %238 = arith.mulf %229, %211 : vector<2x32xf32>
    %239 = arith.mulf %223, %231 : vector<2x32xf32>
    %240 = arith.addf %238, %239 : vector<2x32xf32>
    %241 = math.tanh %240 : vector<2x32xf32>
    %242 = arith.mulf %237, %241 : vector<2x32xf32>
    %243 = vector.shape_cast %39 : vector<2x32xf32> to vector<2x1x32xf32>
    %244 = vector.shape_cast %68 : vector<2x32xf32> to vector<2x1x32xf32>
    %245 = vector.shape_cast %97 : vector<2x32xf32> to vector<2x1x32xf32>
    %246 = vector.shape_cast %126 : vector<2x32xf32> to vector<2x1x32xf32>
    %247 = vector.shape_cast %155 : vector<2x32xf32> to vector<2x1x32xf32>
    %248 = vector.shape_cast %184 : vector<2x32xf32> to vector<2x1x32xf32>
    %249 = vector.shape_cast %213 : vector<2x32xf32> to vector<2x1x32xf32>
    %250 = vector.shape_cast %242 : vector<2x32xf32> to vector<2x1x32xf32>
    %251 = tpu.concatenate %243, %244, %245, %246, %247, %248, %249, %250 in 1 : vector<2x1x32xf32>, vector<2x1x32xf32>, vector<2x1x32xf32>, vector<2x1x32xf32>, vector<2x1x32xf32>, vector<2x1x32xf32>, vector<2x1x32xf32>, vector<2x1x32xf32> -> vector<2x8x32xf32>
    %252 = vector.shape_cast %251 : vector<2x8x32xf32> to vector<16x32xf32>
    %c0_42 = arith.constant 0 : index
    %c0_43 = arith.constant 0 : index
    %253 = vector.load %arg4[%c0_42, %c0_43] : memref<32x128xf32, #tpu.memory_space<vmem>>, vector<32x128xf32>
    %c0_44 = arith.constant 0 : index
    %c0_45 = arith.constant 0 : index
    %254 = vector.load %arg5[%c0_44, %c0_45] : memref<32x128xf32, #tpu.memory_space<vmem>>, vector<32x128xf32>
    %c0_46 = arith.constant 0 : index
    %c0_47 = arith.constant 0 : index
    %255 = vector.load %arg6[%c0_46, %c0_47] : memref<1x128xf32, #tpu.memory_space<vmem>>, vector<1x128xf32>
    %cst_48 = arith.constant dense<0.000000e+00> : vector<16x128xf32>
    %256 = tpu.matmul %252, %253, %cst_48 {dimension_numbers = #tpu.dot_dimension_numbers<[1], [0], [0], [1], [0, 0, 1, 1], [], []>} : vector<16x32xf32>, vector<32x128xf32>, vector<16x128xf32> -> vector<16x128xf32>
    %257 = vector.broadcast %255 : vector<1x128xf32> to vector<16x128xf32>
    %258 = arith.addf %256, %257 : vector<16x128xf32>
    %259 = vector.shape_cast %258 : vector<16x128xf32> to vector<2x8x128xf32>
    %cst_49 = arith.constant 0.000000e+00 : f32
    %260 = vector.broadcast %cst_49 : f32 to vector<2x32xf32>
    %cst_50 = arith.constant 0.000000e+00 : f32
    %261 = vector.broadcast %cst_50 : f32 to vector<2x32xf32>
    %262 = vector.extract_strided_slice %259 {offsets = [0, 0, 0], sizes = [2, 1, 128], strides = [1, 1, 1]} : vector<2x8x128xf32> to vector<2x1x128xf32>
    %263 = vector.shape_cast %262 : vector<2x1x128xf32> to vector<2x128xf32>
    %cst_51 = arith.constant dense<0.000000e+00> : vector<2x128xf32>
    %264 = tpu.matmul %260, %254, %cst_51 {dimension_numbers = #tpu.dot_dimension_numbers<[1], [0], [0], [1], [0, 0, 1, 1], [], []>} : vector<2x32xf32>, vector<32x128xf32>, vector<2x128xf32> -> vector<2x128xf32>
    %265 = arith.addf %263, %264 : vector<2x128xf32>
    %266 = vector.extract_strided_slice %265 {offsets = [0, 0], sizes = [2, 32], strides = [1, 1]} : vector<2x128xf32> to vector<2x32xf32>
    %267 = arith.negf %266 : vector<2x32xf32>
    %268 = math.exp %267 : vector<2x32xf32>
    %cst_52 = arith.constant 1.000000e+00 : f32
    %269 = vector.broadcast %cst_52 : f32 to vector<2x32xf32>
    %270 = arith.addf %269, %268 : vector<2x32xf32>
    %271 = arith.divf %269, %270 : vector<2x32xf32>
    %272 = vector.extract_strided_slice %265 {offsets = [0, 32], sizes = [2, 32], strides = [1, 1]} : vector<2x128xf32> to vector<2x32xf32>
    %273 = arith.negf %272 : vector<2x32xf32>
    %274 = math.exp %273 : vector<2x32xf32>
    %cst_53 = arith.constant 1.000000e+00 : f32
    %275 = vector.broadcast %cst_53 : f32 to vector<2x32xf32>
    %276 = arith.addf %275, %274 : vector<2x32xf32>
    %277 = arith.divf %275, %276 : vector<2x32xf32>
    %278 = vector.extract_strided_slice %265 {offsets = [0, 64], sizes = [2, 32], strides = [1, 1]} : vector<2x128xf32> to vector<2x32xf32>
    %279 = math.tanh %278 : vector<2x32xf32>
    %280 = vector.extract_strided_slice %265 {offsets = [0, 96], sizes = [2, 32], strides = [1, 1]} : vector<2x128xf32> to vector<2x32xf32>
    %281 = arith.negf %280 : vector<2x32xf32>
    %282 = math.exp %281 : vector<2x32xf32>
    %cst_54 = arith.constant 1.000000e+00 : f32
    %283 = vector.broadcast %cst_54 : f32 to vector<2x32xf32>
    %284 = arith.addf %283, %282 : vector<2x32xf32>
    %285 = arith.divf %283, %284 : vector<2x32xf32>
    %286 = arith.mulf %277, %261 : vector<2x32xf32>
    %287 = arith.mulf %271, %279 : vector<2x32xf32>
    %288 = arith.addf %286, %287 : vector<2x32xf32>
    %289 = math.tanh %288 : vector<2x32xf32>
    %290 = arith.mulf %285, %289 : vector<2x32xf32>
    %291 = vector.extract_strided_slice %259 {offsets = [0, 1, 0], sizes = [2, 1, 128], strides = [1, 1, 1]} : vector<2x8x128xf32> to vector<2x1x128xf32>
    %292 = vector.shape_cast %291 : vector<2x1x128xf32> to vector<2x128xf32>
    %cst_55 = arith.constant dense<0.000000e+00> : vector<2x128xf32>
    %293 = tpu.matmul %290, %254, %cst_55 {dimension_numbers = #tpu.dot_dimension_numbers<[1], [0], [0], [1], [0, 0, 1, 1], [], []>} : vector<2x32xf32>, vector<32x128xf32>, vector<2x128xf32> -> vector<2x128xf32>
    %294 = arith.addf %292, %293 : vector<2x128xf32>
    %295 = vector.extract_strided_slice %294 {offsets = [0, 0], sizes = [2, 32], strides = [1, 1]} : vector<2x128xf32> to vector<2x32xf32>
    %296 = arith.negf %295 : vector<2x32xf32>
    %297 = math.exp %296 : vector<2x32xf32>
    %cst_56 = arith.constant 1.000000e+00 : f32
    %298 = vector.broadcast %cst_56 : f32 to vector<2x32xf32>
    %299 = arith.addf %298, %297 : vector<2x32xf32>
    %300 = arith.divf %298, %299 : vector<2x32xf32>
    %301 = vector.extract_strided_slice %294 {offsets = [0, 32], sizes = [2, 32], strides = [1, 1]} : vector<2x128xf32> to vector<2x32xf32>
    %302 = arith.negf %301 : vector<2x32xf32>
    %303 = math.exp %302 : vector<2x32xf32>
    %cst_57 = arith.constant 1.000000e+00 : f32
    %304 = vector.broadcast %cst_57 : f32 to vector<2x32xf32>
    %305 = arith.addf %304, %303 : vector<2x32xf32>
    %306 = arith.divf %304, %305 : vector<2x32xf32>
    %307 = vector.extract_strided_slice %294 {offsets = [0, 64], sizes = [2, 32], strides = [1, 1]} : vector<2x128xf32> to vector<2x32xf32>
    %308 = math.tanh %307 : vector<2x32xf32>
    %309 = vector.extract_strided_slice %294 {offsets = [0, 96], sizes = [2, 32], strides = [1, 1]} : vector<2x128xf32> to vector<2x32xf32>
    %310 = arith.negf %309 : vector<2x32xf32>
    %311 = math.exp %310 : vector<2x32xf32>
    %cst_58 = arith.constant 1.000000e+00 : f32
    %312 = vector.broadcast %cst_58 : f32 to vector<2x32xf32>
    %313 = arith.addf %312, %311 : vector<2x32xf32>
    %314 = arith.divf %312, %313 : vector<2x32xf32>
    %315 = arith.mulf %306, %288 : vector<2x32xf32>
    %316 = arith.mulf %300, %308 : vector<2x32xf32>
    %317 = arith.addf %315, %316 : vector<2x32xf32>
    %318 = math.tanh %317 : vector<2x32xf32>
    %319 = arith.mulf %314, %318 : vector<2x32xf32>
    %320 = vector.extract_strided_slice %259 {offsets = [0, 2, 0], sizes = [2, 1, 128], strides = [1, 1, 1]} : vector<2x8x128xf32> to vector<2x1x128xf32>
    %321 = vector.shape_cast %320 : vector<2x1x128xf32> to vector<2x128xf32>
    %cst_59 = arith.constant dense<0.000000e+00> : vector<2x128xf32>
    %322 = tpu.matmul %319, %254, %cst_59 {dimension_numbers = #tpu.dot_dimension_numbers<[1], [0], [0], [1], [0, 0, 1, 1], [], []>} : vector<2x32xf32>, vector<32x128xf32>, vector<2x128xf32> -> vector<2x128xf32>
    %323 = arith.addf %321, %322 : vector<2x128xf32>
    %324 = vector.extract_strided_slice %323 {offsets = [0, 0], sizes = [2, 32], strides = [1, 1]} : vector<2x128xf32> to vector<2x32xf32>
    %325 = arith.negf %324 : vector<2x32xf32>
    %326 = math.exp %325 : vector<2x32xf32>
    %cst_60 = arith.constant 1.000000e+00 : f32
    %327 = vector.broadcast %cst_60 : f32 to vector<2x32xf32>
    %328 = arith.addf %327, %326 : vector<2x32xf32>
    %329 = arith.divf %327, %328 : vector<2x32xf32>
    %330 = vector.extract_strided_slice %323 {offsets = [0, 32], sizes = [2, 32], strides = [1, 1]} : vector<2x128xf32> to vector<2x32xf32>
    %331 = arith.negf %330 : vector<2x32xf32>
    %332 = math.exp %331 : vector<2x32xf32>
    %cst_61 = arith.constant 1.000000e+00 : f32
    %333 = vector.broadcast %cst_61 : f32 to vector<2x32xf32>
    %334 = arith.addf %333, %332 : vector<2x32xf32>
    %335 = arith.divf %333, %334 : vector<2x32xf32>
    %336 = vector.extract_strided_slice %323 {offsets = [0, 64], sizes = [2, 32], strides = [1, 1]} : vector<2x128xf32> to vector<2x32xf32>
    %337 = math.tanh %336 : vector<2x32xf32>
    %338 = vector.extract_strided_slice %323 {offsets = [0, 96], sizes = [2, 32], strides = [1, 1]} : vector<2x128xf32> to vector<2x32xf32>
    %339 = arith.negf %338 : vector<2x32xf32>
    %340 = math.exp %339 : vector<2x32xf32>
    %cst_62 = arith.constant 1.000000e+00 : f32
    %341 = vector.broadcast %cst_62 : f32 to vector<2x32xf32>
    %342 = arith.addf %341, %340 : vector<2x32xf32>
    %343 = arith.divf %341, %342 : vector<2x32xf32>
    %344 = arith.mulf %335, %317 : vector<2x32xf32>
    %345 = arith.mulf %329, %337 : vector<2x32xf32>
    %346 = arith.addf %344, %345 : vector<2x32xf32>
    %347 = math.tanh %346 : vector<2x32xf32>
    %348 = arith.mulf %343, %347 : vector<2x32xf32>
    %349 = vector.extract_strided_slice %259 {offsets = [0, 3, 0], sizes = [2, 1, 128], strides = [1, 1, 1]} : vector<2x8x128xf32> to vector<2x1x128xf32>
    %350 = vector.shape_cast %349 : vector<2x1x128xf32> to vector<2x128xf32>
    %cst_63 = arith.constant dense<0.000000e+00> : vector<2x128xf32>
    %351 = tpu.matmul %348, %254, %cst_63 {dimension_numbers = #tpu.dot_dimension_numbers<[1], [0], [0], [1], [0, 0, 1, 1], [], []>} : vector<2x32xf32>, vector<32x128xf32>, vector<2x128xf32> -> vector<2x128xf32>
    %352 = arith.addf %350, %351 : vector<2x128xf32>
    %353 = vector.extract_strided_slice %352 {offsets = [0, 0], sizes = [2, 32], strides = [1, 1]} : vector<2x128xf32> to vector<2x32xf32>
    %354 = arith.negf %353 : vector<2x32xf32>
    %355 = math.exp %354 : vector<2x32xf32>
    %cst_64 = arith.constant 1.000000e+00 : f32
    %356 = vector.broadcast %cst_64 : f32 to vector<2x32xf32>
    %357 = arith.addf %356, %355 : vector<2x32xf32>
    %358 = arith.divf %356, %357 : vector<2x32xf32>
    %359 = vector.extract_strided_slice %352 {offsets = [0, 32], sizes = [2, 32], strides = [1, 1]} : vector<2x128xf32> to vector<2x32xf32>
    %360 = arith.negf %359 : vector<2x32xf32>
    %361 = math.exp %360 : vector<2x32xf32>
    %cst_65 = arith.constant 1.000000e+00 : f32
    %362 = vector.broadcast %cst_65 : f32 to vector<2x32xf32>
    %363 = arith.addf %362, %361 : vector<2x32xf32>
    %364 = arith.divf %362, %363 : vector<2x32xf32>
    %365 = vector.extract_strided_slice %352 {offsets = [0, 64], sizes = [2, 32], strides = [1, 1]} : vector<2x128xf32> to vector<2x32xf32>
    %366 = math.tanh %365 : vector<2x32xf32>
    %367 = vector.extract_strided_slice %352 {offsets = [0, 96], sizes = [2, 32], strides = [1, 1]} : vector<2x128xf32> to vector<2x32xf32>
    %368 = arith.negf %367 : vector<2x32xf32>
    %369 = math.exp %368 : vector<2x32xf32>
    %cst_66 = arith.constant 1.000000e+00 : f32
    %370 = vector.broadcast %cst_66 : f32 to vector<2x32xf32>
    %371 = arith.addf %370, %369 : vector<2x32xf32>
    %372 = arith.divf %370, %371 : vector<2x32xf32>
    %373 = arith.mulf %364, %346 : vector<2x32xf32>
    %374 = arith.mulf %358, %366 : vector<2x32xf32>
    %375 = arith.addf %373, %374 : vector<2x32xf32>
    %376 = math.tanh %375 : vector<2x32xf32>
    %377 = arith.mulf %372, %376 : vector<2x32xf32>
    %378 = vector.extract_strided_slice %259 {offsets = [0, 4, 0], sizes = [2, 1, 128], strides = [1, 1, 1]} : vector<2x8x128xf32> to vector<2x1x128xf32>
    %379 = vector.shape_cast %378 : vector<2x1x128xf32> to vector<2x128xf32>
    %cst_67 = arith.constant dense<0.000000e+00> : vector<2x128xf32>
    %380 = tpu.matmul %377, %254, %cst_67 {dimension_numbers = #tpu.dot_dimension_numbers<[1], [0], [0], [1], [0, 0, 1, 1], [], []>} : vector<2x32xf32>, vector<32x128xf32>, vector<2x128xf32> -> vector<2x128xf32>
    %381 = arith.addf %379, %380 : vector<2x128xf32>
    %382 = vector.extract_strided_slice %381 {offsets = [0, 0], sizes = [2, 32], strides = [1, 1]} : vector<2x128xf32> to vector<2x32xf32>
    %383 = arith.negf %382 : vector<2x32xf32>
    %384 = math.exp %383 : vector<2x32xf32>
    %cst_68 = arith.constant 1.000000e+00 : f32
    %385 = vector.broadcast %cst_68 : f32 to vector<2x32xf32>
    %386 = arith.addf %385, %384 : vector<2x32xf32>
    %387 = arith.divf %385, %386 : vector<2x32xf32>
    %388 = vector.extract_strided_slice %381 {offsets = [0, 32], sizes = [2, 32], strides = [1, 1]} : vector<2x128xf32> to vector<2x32xf32>
    %389 = arith.negf %388 : vector<2x32xf32>
    %390 = math.exp %389 : vector<2x32xf32>
    %cst_69 = arith.constant 1.000000e+00 : f32
    %391 = vector.broadcast %cst_69 : f32 to vector<2x32xf32>
    %392 = arith.addf %391, %390 : vector<2x32xf32>
    %393 = arith.divf %391, %392 : vector<2x32xf32>
    %394 = vector.extract_strided_slice %381 {offsets = [0, 64], sizes = [2, 32], strides = [1, 1]} : vector<2x128xf32> to vector<2x32xf32>
    %395 = math.tanh %394 : vector<2x32xf32>
    %396 = vector.extract_strided_slice %381 {offsets = [0, 96], sizes = [2, 32], strides = [1, 1]} : vector<2x128xf32> to vector<2x32xf32>
    %397 = arith.negf %396 : vector<2x32xf32>
    %398 = math.exp %397 : vector<2x32xf32>
    %cst_70 = arith.constant 1.000000e+00 : f32
    %399 = vector.broadcast %cst_70 : f32 to vector<2x32xf32>
    %400 = arith.addf %399, %398 : vector<2x32xf32>
    %401 = arith.divf %399, %400 : vector<2x32xf32>
    %402 = arith.mulf %393, %375 : vector<2x32xf32>
    %403 = arith.mulf %387, %395 : vector<2x32xf32>
    %404 = arith.addf %402, %403 : vector<2x32xf32>
    %405 = math.tanh %404 : vector<2x32xf32>
    %406 = arith.mulf %401, %405 : vector<2x32xf32>
    %407 = vector.extract_strided_slice %259 {offsets = [0, 5, 0], sizes = [2, 1, 128], strides = [1, 1, 1]} : vector<2x8x128xf32> to vector<2x1x128xf32>
    %408 = vector.shape_cast %407 : vector<2x1x128xf32> to vector<2x128xf32>
    %cst_71 = arith.constant dense<0.000000e+00> : vector<2x128xf32>
    %409 = tpu.matmul %406, %254, %cst_71 {dimension_numbers = #tpu.dot_dimension_numbers<[1], [0], [0], [1], [0, 0, 1, 1], [], []>} : vector<2x32xf32>, vector<32x128xf32>, vector<2x128xf32> -> vector<2x128xf32>
    %410 = arith.addf %408, %409 : vector<2x128xf32>
    %411 = vector.extract_strided_slice %410 {offsets = [0, 0], sizes = [2, 32], strides = [1, 1]} : vector<2x128xf32> to vector<2x32xf32>
    %412 = arith.negf %411 : vector<2x32xf32>
    %413 = math.exp %412 : vector<2x32xf32>
    %cst_72 = arith.constant 1.000000e+00 : f32
    %414 = vector.broadcast %cst_72 : f32 to vector<2x32xf32>
    %415 = arith.addf %414, %413 : vector<2x32xf32>
    %416 = arith.divf %414, %415 : vector<2x32xf32>
    %417 = vector.extract_strided_slice %410 {offsets = [0, 32], sizes = [2, 32], strides = [1, 1]} : vector<2x128xf32> to vector<2x32xf32>
    %418 = arith.negf %417 : vector<2x32xf32>
    %419 = math.exp %418 : vector<2x32xf32>
    %cst_73 = arith.constant 1.000000e+00 : f32
    %420 = vector.broadcast %cst_73 : f32 to vector<2x32xf32>
    %421 = arith.addf %420, %419 : vector<2x32xf32>
    %422 = arith.divf %420, %421 : vector<2x32xf32>
    %423 = vector.extract_strided_slice %410 {offsets = [0, 64], sizes = [2, 32], strides = [1, 1]} : vector<2x128xf32> to vector<2x32xf32>
    %424 = math.tanh %423 : vector<2x32xf32>
    %425 = vector.extract_strided_slice %410 {offsets = [0, 96], sizes = [2, 32], strides = [1, 1]} : vector<2x128xf32> to vector<2x32xf32>
    %426 = arith.negf %425 : vector<2x32xf32>
    %427 = math.exp %426 : vector<2x32xf32>
    %cst_74 = arith.constant 1.000000e+00 : f32
    %428 = vector.broadcast %cst_74 : f32 to vector<2x32xf32>
    %429 = arith.addf %428, %427 : vector<2x32xf32>
    %430 = arith.divf %428, %429 : vector<2x32xf32>
    %431 = arith.mulf %422, %404 : vector<2x32xf32>
    %432 = arith.mulf %416, %424 : vector<2x32xf32>
    %433 = arith.addf %431, %432 : vector<2x32xf32>
    %434 = math.tanh %433 : vector<2x32xf32>
    %435 = arith.mulf %430, %434 : vector<2x32xf32>
    %436 = vector.extract_strided_slice %259 {offsets = [0, 6, 0], sizes = [2, 1, 128], strides = [1, 1, 1]} : vector<2x8x128xf32> to vector<2x1x128xf32>
    %437 = vector.shape_cast %436 : vector<2x1x128xf32> to vector<2x128xf32>
    %cst_75 = arith.constant dense<0.000000e+00> : vector<2x128xf32>
    %438 = tpu.matmul %435, %254, %cst_75 {dimension_numbers = #tpu.dot_dimension_numbers<[1], [0], [0], [1], [0, 0, 1, 1], [], []>} : vector<2x32xf32>, vector<32x128xf32>, vector<2x128xf32> -> vector<2x128xf32>
    %439 = arith.addf %437, %438 : vector<2x128xf32>
    %440 = vector.extract_strided_slice %439 {offsets = [0, 0], sizes = [2, 32], strides = [1, 1]} : vector<2x128xf32> to vector<2x32xf32>
    %441 = arith.negf %440 : vector<2x32xf32>
    %442 = math.exp %441 : vector<2x32xf32>
    %cst_76 = arith.constant 1.000000e+00 : f32
    %443 = vector.broadcast %cst_76 : f32 to vector<2x32xf32>
    %444 = arith.addf %443, %442 : vector<2x32xf32>
    %445 = arith.divf %443, %444 : vector<2x32xf32>
    %446 = vector.extract_strided_slice %439 {offsets = [0, 32], sizes = [2, 32], strides = [1, 1]} : vector<2x128xf32> to vector<2x32xf32>
    %447 = arith.negf %446 : vector<2x32xf32>
    %448 = math.exp %447 : vector<2x32xf32>
    %cst_77 = arith.constant 1.000000e+00 : f32
    %449 = vector.broadcast %cst_77 : f32 to vector<2x32xf32>
    %450 = arith.addf %449, %448 : vector<2x32xf32>
    %451 = arith.divf %449, %450 : vector<2x32xf32>
    %452 = vector.extract_strided_slice %439 {offsets = [0, 64], sizes = [2, 32], strides = [1, 1]} : vector<2x128xf32> to vector<2x32xf32>
    %453 = math.tanh %452 : vector<2x32xf32>
    %454 = vector.extract_strided_slice %439 {offsets = [0, 96], sizes = [2, 32], strides = [1, 1]} : vector<2x128xf32> to vector<2x32xf32>
    %455 = arith.negf %454 : vector<2x32xf32>
    %456 = math.exp %455 : vector<2x32xf32>
    %cst_78 = arith.constant 1.000000e+00 : f32
    %457 = vector.broadcast %cst_78 : f32 to vector<2x32xf32>
    %458 = arith.addf %457, %456 : vector<2x32xf32>
    %459 = arith.divf %457, %458 : vector<2x32xf32>
    %460 = arith.mulf %451, %433 : vector<2x32xf32>
    %461 = arith.mulf %445, %453 : vector<2x32xf32>
    %462 = arith.addf %460, %461 : vector<2x32xf32>
    %463 = math.tanh %462 : vector<2x32xf32>
    %464 = arith.mulf %459, %463 : vector<2x32xf32>
    %465 = vector.extract_strided_slice %259 {offsets = [0, 7, 0], sizes = [2, 1, 128], strides = [1, 1, 1]} : vector<2x8x128xf32> to vector<2x1x128xf32>
    %466 = vector.shape_cast %465 : vector<2x1x128xf32> to vector<2x128xf32>
    %cst_79 = arith.constant dense<0.000000e+00> : vector<2x128xf32>
    %467 = tpu.matmul %464, %254, %cst_79 {dimension_numbers = #tpu.dot_dimension_numbers<[1], [0], [0], [1], [0, 0, 1, 1], [], []>} : vector<2x32xf32>, vector<32x128xf32>, vector<2x128xf32> -> vector<2x128xf32>
    %468 = arith.addf %466, %467 : vector<2x128xf32>
    %469 = vector.extract_strided_slice %468 {offsets = [0, 0], sizes = [2, 32], strides = [1, 1]} : vector<2x128xf32> to vector<2x32xf32>
    %470 = arith.negf %469 : vector<2x32xf32>
    %471 = math.exp %470 : vector<2x32xf32>
    %cst_80 = arith.constant 1.000000e+00 : f32
    %472 = vector.broadcast %cst_80 : f32 to vector<2x32xf32>
    %473 = arith.addf %472, %471 : vector<2x32xf32>
    %474 = arith.divf %472, %473 : vector<2x32xf32>
    %475 = vector.extract_strided_slice %468 {offsets = [0, 32], sizes = [2, 32], strides = [1, 1]} : vector<2x128xf32> to vector<2x32xf32>
    %476 = arith.negf %475 : vector<2x32xf32>
    %477 = math.exp %476 : vector<2x32xf32>
    %cst_81 = arith.constant 1.000000e+00 : f32
    %478 = vector.broadcast %cst_81 : f32 to vector<2x32xf32>
    %479 = arith.addf %478, %477 : vector<2x32xf32>
    %480 = arith.divf %478, %479 : vector<2x32xf32>
    %481 = vector.extract_strided_slice %468 {offsets = [0, 64], sizes = [2, 32], strides = [1, 1]} : vector<2x128xf32> to vector<2x32xf32>
    %482 = math.tanh %481 : vector<2x32xf32>
    %483 = vector.extract_strided_slice %468 {offsets = [0, 96], sizes = [2, 32], strides = [1, 1]} : vector<2x128xf32> to vector<2x32xf32>
    %484 = arith.negf %483 : vector<2x32xf32>
    %485 = math.exp %484 : vector<2x32xf32>
    %cst_82 = arith.constant 1.000000e+00 : f32
    %486 = vector.broadcast %cst_82 : f32 to vector<2x32xf32>
    %487 = arith.addf %486, %485 : vector<2x32xf32>
    %488 = arith.divf %486, %487 : vector<2x32xf32>
    %489 = arith.mulf %480, %462 : vector<2x32xf32>
    %490 = arith.mulf %474, %482 : vector<2x32xf32>
    %491 = arith.addf %489, %490 : vector<2x32xf32>
    %492 = math.tanh %491 : vector<2x32xf32>
    %493 = arith.mulf %488, %492 : vector<2x32xf32>
    %494 = tpu.concatenate %290, %319, %348, %377, %406, %435, %464, %493 in 1 : vector<2x32xf32>, vector<2x32xf32>, vector<2x32xf32>, vector<2x32xf32>, vector<2x32xf32>, vector<2x32xf32>, vector<2x32xf32>, vector<2x32xf32> -> vector<2x256xf32>
    %c0_83 = arith.constant 0 : index
    %c0_84 = arith.constant 0 : index
    %495 = vector.load %arg7[%c0_83, %c0_84] : memref<256x8xf32, #tpu.memory_space<vmem>>, vector<256x8xf32>
    %cst_85 = arith.constant dense<0.000000e+00> : vector<2x8xf32>
    %496 = tpu.matmul %494, %495, %cst_85 {dimension_numbers = #tpu.dot_dimension_numbers<[1], [0], [0], [1], [0, 0, 1, 1], [], []>} : vector<2x256xf32>, vector<256x8xf32>, vector<2x8xf32> -> vector<2x8xf32>
    %c0_86 = arith.constant 0 : index
    %c0_87 = arith.constant 0 : index
    %497 = vector.load %arg8[%c0_86, %c0_87] : memref<1x8xf32, #tpu.memory_space<vmem>>, vector<1x8xf32>
    %498 = vector.broadcast %497 : vector<1x8xf32> to vector<2x8xf32>
    %499 = arith.addf %496, %498 : vector<2x8xf32>
    %c0_88 = arith.constant 0 : index
    %c0_89 = arith.constant 0 : index
    %500 = vector.load %arg9[%c0_88, %c0_89] : memref<2x8xf32, #tpu.memory_space<vmem>>, vector<2x8xf32>
    tpu.vector_store %arg9[%c0_88, %c0_89], %499 {strides = array<i32>} : memref<2x8xf32, #tpu.memory_space<vmem>>, vector<2x8xf32>,
    return
  }
}

</mosaic_0001>

<llo_original>
// kernel: trajectory_predictor_forward.1
$region0: #{trajectory_predictor_forward.1}
  #allocation0 [shape = 'u32[]', space=smem, size = 0x4, offset = 0x4, fixed_abs, tag = 'smem constant byte address 0x4 - core index']
  #allocation1 [shape = 'u32[144,128]{1,0:T(1,128)}', space=vmem, size = 0x12000, scoped, tag = 'internal scratch']
  %s0 = inlined_call_operand.vmem [shape: f32[2,8,2], index: 0, kind: input, shape index: {}]
  %s1 = inlined_call_operand.vmem [shape: f32[2,128], index: 1, kind: input, shape index: {}]
  %s2 = inlined_call_operand.vmem [shape: f32[32,128], index: 2, kind: input, shape index: {}]
  %s3 = inlined_call_operand.vmem [shape: f32[1,128], index: 3, kind: input, shape index: {}]
  %s4 = inlined_call_operand.vmem [shape: f32[32,128], index: 4, kind: input, shape index: {}]
  %s5 = inlined_call_operand.vmem [shape: f32[32,128], index: 5, kind: input, shape index: {}]
  %s6 = inlined_call_operand.vmem [shape: f32[1,128], index: 6, kind: input, shape index: {}]
  %s7 = inlined_call_operand.vmem [shape: f32[256,8], index: 7, kind: input, shape index: {}]
  %s8 = inlined_call_operand.vmem [shape: f32[1,8], index: 8, kind: input, shape index: {}]
  %s9 = inlined_call_operand.vmem [shape: f32[2,8], index: 9, kind: output, shape index: {}]
  %s10 = sld [smem:[#allocation0]]
  $region46: #{trajectory_predictor_forward.1} parent=0
    _
  %s12 = ssub.s32 1, %s10
  %s13 = scalar_select 0, %s12, %s10
  // Predicated region
  $region2: #{trajectory_predictor_forward.1} parent=0 // pred_check
    _
  $region3: #{trajectory_predictor_forward.1} parent=0 // pred_check_branch
    %15 = sbr.rel (0) target = $region5
  $region4: #{trajectory_predictor_forward.1} parent=0 // pred_region
    _
  $region5: #{trajectory_predictor_forward.1} parent=0 // pred_fallthru
    _
  // Predicated region
  $region6: #{trajectory_predictor_forward.1} parent=0 // pred_check
    _
  $region7: #{trajectory_predictor_forward.1} parent=0 // pred_check_branch
    %17 = sbr.rel (0) target = $region9
  $region8: #{trajectory_predictor_forward.1} parent=0 // pred_region
    _
  $region9: #{trajectory_predictor_forward.1} parent=0 // pred_fallthru
    _
  // Predicated region
  $region10: #{trajectory_predictor_forward.1} parent=0 // pred_check
    _
  $region11: #{trajectory_predictor_forward.1} parent=0 // pred_check_branch
    %19 = sbr.rel (0) target = $region13
  $region12: #{trajectory_predictor_forward.1} parent=0 // pred_region
    _
  $region13: #{trajectory_predictor_forward.1} parent=0 // pred_fallthru
    _
  // Predicated region
  $region14: #{trajectory_predictor_forward.1} parent=0 // pred_check
    _
  $region15: #{trajectory_predictor_forward.1} parent=0 // pred_check_branch
    %21 = sbr.rel (0) target = $region17
  $region16: #{trajectory_predictor_forward.1} parent=0 // pred_region
    _
  $region17: #{trajectory_predictor_forward.1} parent=0 // pred_fallthru
    _
  // Predicated region
  $region18: #{trajectory_predictor_forward.1} parent=0 // pred_check
    _
  $region19: #{trajectory_predictor_forward.1} parent=0 // pred_check_branch
    %23 = sbr.rel (0) target = $region21
  $region20: #{trajectory_predictor_forward.1} parent=0 // pred_region
    _
  $region21: #{trajectory_predictor_forward.1} parent=0 // pred_fallthru
    _
  // Predicated region
  $region22: #{trajectory_predictor_forward.1} parent=0 // pred_check
    _
  $region23: #{trajectory_predictor_forward.1} parent=0 // pred_check_branch
    %25 = sbr.rel (0) target = $region25
  $region24: #{trajectory_predictor_forward.1} parent=0 // pred_region
    _
  $region25: #{trajectory_predictor_forward.1} parent=0 // pred_fallthru
    _
  // Predicated region
  $region26: #{trajectory_predictor_forward.1} parent=0 // pred_check
    _
  $region27: #{trajectory_predictor_forward.1} parent=0 // pred_check_branch
    %27 = sbr.rel (0) target = $region29
  $region28: #{trajectory_predictor_forward.1} parent=0 // pred_region
    _
  $region29: #{trajectory_predictor_forward.1} parent=0 // pred_fallthru
    _
  // Predicated region
  $region30: #{trajectory_predictor_forward.1} parent=0 // pred_check
    _
  $region31: #{trajectory_predictor_forward.1} parent=0 // pred_check_branch
    %29 = sbr.rel (0) target = $region33
  $region32: #{trajectory_predictor_forward.1} parent=0 // pred_region
    _
  $region33: #{trajectory_predictor_forward.1} parent=0 // pred_fallthru
    _
  // Predicated region
  $region34: #{trajectory_predictor_forward.1} parent=0 // pred_check
    _
  $region35: #{trajectory_predictor_forward.1} parent=0 // pred_check_branch
    %31 = sbr.rel (0) target = $region37
  $region36: #{trajectory_predictor_forward.1} parent=0 // pred_region
    _
  $region37: #{trajectory_predictor_forward.1} parent=0 // pred_fallthru
    _
  %v32 = vld [vmem:[%s0] sm:$0xff]
  %v33 = vld [vmem:[%s0 + $0x8] sm:$0xff]
  %v34 = vld [vmem:[%s1] sm:$0x3]
  %v35 = vld [vmem:[%s2] sm:$0xff]
  %v36 = vld [vmem:[%s2 + $0x8] sm:$0xff]
  %v37 = vld [vmem:[%s2 + $0x10] sm:$0xff]
  %v38 = vld [vmem:[%s2 + $0x18] sm:$0xff]
  %v39 = vld [vmem:[%s3] sm:$0x1]
  %v41 = vlaneseq
  %v42 = vshrl.u32 %v41, 7
  %v43 = vsub.s32 0, %v42
  %v44 = vrot.slane %v39, %v43
  %vm46 = vcmask 15360
  %v48 = vsel %vm46, %v32, 0
  %v51 = vsel %vm46, %v33, 0
  %vm53 = vcmask 1041408
  %v55 = vsel %vm53, %v34, 0
  %57 = vmatprep.subr.mxu0 0.0
  %58 = vmatpush1.msra.mxu0 %v55
  %59 = vmatprep.subr.mxu0 0.0
  %60 = vmatpush1.msra.mxu0 0.0
  %61 = vmatprep.subr.mxu0 0.0
  %62 = vmatpush1.msra.mxu0 0.0
  %63 = vmatprep.subr.mxu0 0.0
  %64 = vmatpush1.msra.mxu0 0.0
  %65 = vmatprep.subr.mxu0 0.0
  %66 = vmatpush1.msra.mxu0 0.0
  %67 = vmatprep.subr.mxu0 0.0
  %68 = vmatpush1.msra.mxu0 0.0
  %69 = vmatprep.subr.mxu0 0.0
  %70 = vmatpush1.msra.mxu0 0.0
  %71 = vmatprep.subr.mxu0 0.0
  %72 = vmatpush1.msra.mxu0 0.0
  %73 = vmatprep.subr.mxu0 0.0
  %74 = vmatpush1.msra.mxu0 0.0
  %75 = vmatprep.subr.mxu0 0.0
  %76 = vmatpush1.msra.mxu0 0.0
  %77 = vmatprep.subr.mxu0 0.0
  %78 = vmatpush1.msra.mxu0 0.0
  %79 = vmatprep.subr.mxu0 0.0
  %80 = vmatpush1.msra.mxu0 0.0
  %81 = vmatprep.subr.mxu0 0.0
  %82 = vmatpush1.msra.mxu0 0.0
  %83 = vmatprep.subr.mxu0 0.0
  %84 = vmatpush1.msra.mxu0 0.0
  %85 = vmatprep.subr.mxu0 0.0
  %86 = vmatpush1.msra.mxu0 0.0
  %87 = vmatprep.subr.mxu0 0.0
  %88 = vmatpush1.msra.mxu0 0.0
  %89 = vmatprep.subr.mxu0 0.0
  %90 = vmatpush1.msra.mxu0 0.0
  %91 = vmatprep.subr.mxu0 0.0
  %92 = vmatpush1.msra.mxu0 0.0
  %93 = vmatprep.subr.mxu0 0.0
  %94 = vmatpush1.msra.mxu0 0.0
  %95 = vmatprep.subr.mxu0 0.0
  %96 = vmatpush1.msra.mxu0 0.0
  %97 = vmatprep.subr.mxu0 0.0
  %98 = vmatpush1.msra.mxu0 0.0
  %99 = vmatprep.subr.mxu0 0.0
  %100 = vmatpush1.msra.mxu0 0.0
  %101 = vmatprep.subr.mxu0 0.0
  %102 = vmatpush1.msra.mxu0 0.0
  %103 = vmatprep.subr.mxu0 0.0
  %104 = vmatpush1.msra.mxu0 0.0
  %105 = vmatprep.subr.mxu0 0.0
  %106 = vmatpush1.msra.mxu0 0.0
  %107 = vmatprep.subr.mxu0 0.0
  %108 = vmatpush1.msra.mxu0 0.0
  %109 = vmatprep.subr.mxu0 0.0
  %110 = vmatpush1.msra.mxu0 0.0
  %111 = vmatprep.subr.mxu0 0.0
  %112 = vmatpush1.msra.mxu0 0.0
  %113 = vmatprep.subr.mxu0 0.0
  %114 = vmatpush1.msra.mxu0 0.0
  %115 = vmatprep.subr.mxu0 0.0
  %116 = vmatpush1.msra.mxu0 0.0
  %117 = vmatprep.subr.mxu0 0.0
  %118 = vmatpush1.msra.mxu0 0.0
  %119 = vmatprep.subr.mxu0 0.0
  %120 = vmatpush1.msra.mxu0 0.0
  %121 = vmatprep.mubr.f32.mxu0 0.0
  %122 = vmatmul.mubr.f32.gmra.mrb[0].mxu0 %v48
  %v123 = vpop.f32.mrb[0].mxu0
  %v124 = vadd.f32 %v44, %v123
  %v125 = vpop.f32.mrb[0].mxu0
  %126 = vmatprep.mubr.f32.mxu0 0.0
  %127 = vmatmul.mubr.f32.gmra.mrb[0].mxu0 %v51
  %v128 = vpop.f32.mrb[0].mxu0
  %v129 = vadd.f32 %v44, %v128
  %v130 = vpop.f32.mrb[0].mxu0
  %131 = vdwg.mxu0
  %vm132 = vcmask 261120
  %v134 = vsel %vm132, 0.0, 0
  %136 = vmatprep.subr.mxu0 0.0
  %137 = vmatpush1.msra.mxu0 %v35
  %138 = vmatprep.subr.mxu0 0.0
  %139 = vmatpush1.msra.mxu0 %v36
  %140 = vmatprep.subr.mxu0 0.0
  %141 = vmatpush1.msra.mxu0 %v37
  %142 = vmatprep.subr.mxu0 0.0
  %143 = vmatpush1.msra.mxu0 %v38
  %144 = vmatprep.subr.mxu0 0.0
  %145 = vmatpush1.msra.mxu0 0.0
  %146 = vmatprep.subr.mxu0 0.0
  %147 = vmatpush1.msra.mxu0 0.0
  %148 = vmatprep.subr.mxu0 0.0
  %149 = vmatpush1.msra.mxu0 0.0
  %150 = vmatprep.subr.mxu0 0.0
  %151 = vmatpush1.msra.mxu0 0.0
  %152 = vmatprep.subr.mxu0 0.0
  %153 = vmatpush1.msra.mxu0 0.0
  %154 = vmatprep.subr.mxu0 0.0
  %155 = vmatpush1.msra.mxu0 0.0
  %156 = vmatprep.subr.mxu0 0.0
  %157 = vmatpush1.msra.mxu0 0.0
  %158 = vmatprep.subr.mxu0 0.0
  %159 = vmatpush1.msra.mxu0 0.0
  %160 = vmatprep.subr.mxu0 0.0
  %161 = vmatpush1.msra.mxu0 0.0
  %162 = vmatprep.subr.mxu0 0.0
  %163 = vmatpush1.msra.mxu0 0.0
  %164 = vmatprep.subr.mxu0 0.0
  %165 = vmatpush1.msra.mxu0 0.0
  %166 = vmatprep.subr.mxu0 0.0
  %167 = vmatpush1.msra.mxu0 0.0
  %168 = vmatprep.subr.mxu0 0.0
  %169 = vmatpush1.msra.mxu0 0.0
  %170 = vmatprep.subr.mxu0 0.0
  %171 = vmatpush1.msra.mxu0 0.0
  %172 = vmatprep.subr.mxu0 0.0
  %173 = vmatpush1.msra.mxu0 0.0
  %174 = vmatprep.subr.mxu0 0.0
  %175 = vmatpush1.msra.mxu0 0.0
  %176 = vmatprep.subr.mxu0 0.0
  %177 = vmatpush1.msra.mxu0 0.0
  %178 = vmatprep.subr.mxu0 0.0
  %179 = vmatpush1.msra.mxu0 0.0
  %180 = vmatprep.subr.mxu0 0.0
  %181 = vmatpush1.msra.mxu0 0.0
  %182 = vmatprep.subr.mxu0 0.0
  %183 = vmatpush1.msra.mxu0 0.0
  %184 = vmatprep.subr.mxu0 0.0
  %185 = vmatpush1.msra.mxu0 0.0
  %186 = vmatprep.subr.mxu0 0.0
  %187 = vmatpush1.msra.mxu0 0.0
  %188 = vmatprep.subr.mxu0 0.0
  %189 = vmatpush1.msra.mxu0 0.0
  %190 = vmatprep.subr.mxu0 0.0
  %191 = vmatpush1.msra.mxu0 0.0
  %192 = vmatprep.subr.mxu0 0.0
  %193 = vmatpush1.msra.mxu0 0.0
  %194 = vmatprep.subr.mxu0 0.0
  %195 = vmatpush1.msra.mxu0 0.0
  %196 = vmatprep.subr.mxu0 0.0
  %197 = vmatpush1.msra.mxu0 0.0
  %198 = vmatprep.subr.mxu0 0.0
  %199 = vmatpush1.msra.mxu0 0.0
  %200 = vmatprep.mubr.f32.mxu0 0.0
  %201 = vmatmul.mubr.f32.gmra.mrb[0].mxu0 %v134
  %v202 = vpop.f32.mrb[0].mxu0
  %v203 = vadd.f32 0.0, %v202
  %v204 = vpop.f32.mrb[0].mxu0
  %205 = vdwg.mxu0
  %v207 = vrot.slane %v203, 1
  %v210 = vadd.f32 %v124, %v203
  %v211 = vadd.f32 %v129, %v207
  %v212 = vxor.u32 %v210, 2147483648
  %v213 = vxor.u32 %v211, 2147483648
  %v214 = vmul.f32 %v212, 1.442695
  %v215 = vpow.pop %v214
  %v216 = vmul.f32 %v213, 1.442695
  %v217 = vpow.pop %v216
  %v218 = vadd.f32 %v215, 1.0
  %v219 = vadd.f32 %v217, 1.0
  %v220 = vrcp.pop %v218
  %v221 = vmul.f32 1.0, %v220
  %v222 = vrcp.pop %v219
  %v223 = vmul.f32 1.0, %v222
  %v224 = vtanh.pop %v210
  %v225 = vtanh.pop %v211
  %v226 = vmul.f32 %v221, 0.0
  %v227 = vmul.f32 %v223, 0.0
  %230 = vrot.lane.b32.xlu0 %v224, 64
  %v231 = vpop.permute.xlu0 %230
  %232 = vrot.lane.b32.xlu0 %v225, 64
  %v233 = vpop.permute.xlu0 %232
  %v236 = vmul.f32 %v221, %v231
  %v237 = vmul.f32 %v223, %v233
  %240 = vrot.lane.b32.xlu0 %v236, 32
  %v241 = vpop.permute.xlu0 %240
  %242 = vrot.lane.b32.xlu0 %v237, 32
  %v243 = vpop.permute.xlu0 %242
  %v246 = vadd.f32 %v226, %v241
  %v247 = vadd.f32 %v227, %v243
  %v248 = vtanh.pop %v246
  %v249 = vtanh.pop %v247
  %252 = vrot.lane.b32.xlu0 %v248, 64
  %v253 = vpop.permute.xlu0 %252
  %254 = vrot.lane.b32.xlu0 %v249, 64
  %v255 = vpop.permute.xlu0 %254
  %v258 = vmul.f32 %v221, %v253
  %v259 = vmul.f32 %v223, %v255
  %v262 = vrot.slane %v259, 7
  %vm263 = vcmask 1041409
  %v264 = vsel %vm263, %v262, %v258
  %265 = vrot.lane.b32.xlu0 %v264, 32
  %v266 = vpop.permute.xlu0 %265
  %v267 = vsel %vm132, %v266, 0
  %269 = vmatprep.subr.mxu0 0.0
  %270 = vmatpush1.msra.mxu0 %v35
  %271 = vmatprep.subr.mxu0 0.0
  %272 = vmatpush1.msra.mxu0 %v36
  %273 = vmatprep.subr.mxu0 0.0
  %274 = vmatpush1.msra.mxu0 %v37
  %275 = vmatprep.subr.mxu0 0.0
  %276 = vmatpush1.msra.mxu0 %v38
  %277 = vmatprep.subr.mxu0 0.0
  %278 = vmatpush1.msra.mxu0 0.0
  %279 = vmatprep.subr.mxu0 0.0
  %280 = vmatpush1.msra.mxu0 0.0
  %281 = vmatprep.subr.mxu0 0.0
  %282 = vmatpush1.msra.mxu0 0.0
  %283 = vmatprep.subr.mxu0 0.0
  %284 = vmatpush1.msra.mxu0 0.0
  %285 = vmatprep.subr.mxu0 0.0
  %286 = vmatpush1.msra.mxu0 0.0
  %287 = vmatprep.subr.mxu0 0.0
  %288 = vmatpush1.msra.mxu0 0.0
  %289 = vmatprep.subr.mxu0 0.0
  %290 = vmatpush1.msra.mxu0 0.0
  %291 = vmatprep.subr.mxu0 0.0
  %292 = vmatpush1.msra.mxu0 0.0
  %293 = vmatprep.subr.mxu0 0.0
  %294 = vmatpush1.msra.mxu0 0.0
  %295 = vmatprep.subr.mxu0 0.0
  %296 = vmatpush1.msra.mxu0 0.0
  %297 = vmatprep.subr.mxu0 0.0
  %298 = vmatpush1.msra.mxu0 0.0
  %299 = vmatprep.subr.mxu0 0.0
  %300 = vmatpush1.msra.mxu0 0.0
  %301 = vmatprep.subr.mxu0 0.0
  %302 = vmatpush1.msra.mxu0 0.0
  %303 = vmatprep.subr.mxu0 0.0
  %304 = vmatpush1.msra.mxu0 0.0
  %305 = vmatprep.subr.mxu0 0.0
  %306 = vmatpush1.msra.mxu0 0.0
  %307 = vmatprep.subr.mxu0 0.0
  %308 = vmatpush1.msra.mxu0 0.0
  %309 = vmatprep.subr.mxu0 0.0
  %310 = vmatpush1.msra.mxu0 0.0
  %311 = vmatprep.subr.mxu0 0.0
  %312 = vmatpush1.msra.mxu0 0.0
  %313 = vmatprep.subr.mxu0 0.0
  %314 = vmatpush1.msra.mxu0 0.0
  %315 = vmatprep.subr.mxu0 0.0
  %316 = vmatpush1.msra.mxu0 0.0
  %317 = vmatprep.subr.mxu0 0.0
  %318 = vmatpush1.msra.mxu0 0.0
  %319 = vmatprep.subr.mxu0 0.0
  %320 = vmatpush1.msra.mxu0 0.0
  %321 = vmatprep.subr.mxu0 0.0
  %322 = vmatpush1.msra.mxu0 0.0
  %323 = vmatprep.subr.mxu0 0.0
  %324 = vmatpush1.msra.mxu0 0.0
  %325 = vmatprep.subr.mxu0 0.0
  %326 = vmatpush1.msra.mxu0 0.0
  %327 = vmatprep.subr.mxu0 0.0
  %328 = vmatpush1.msra.mxu0 0.0
  %329 = vmatprep.subr.mxu0 0.0
  %330 = vmatpush1.msra.mxu0 0.0
  %331 = vmatprep.subr.mxu0 0.0
  %332 = vmatpush1.msra.mxu0 0.0
  %333 = vmatprep.mubr.f32.mxu0 0.0
  %334 = vmatmul.mubr.f32.gmra.mrb[0].mxu0 %v267
  %v335 = vpop.f32.mrb[0].mxu0
  %v336 = vadd.f32 0.0, %v335
  %v337 = vpop.f32.mrb[0].mxu0
  %338 = vdwg.mxu0
  %v340 = vrot.slane %v336, 7
  %v343 = vadd.f32 %v124, %v340
  %v344 = vadd.f32 %v129, %v336
  %v345 = vxor.u32 %v343, 2147483648
  %v346 = vxor.u32 %v344, 2147483648
  %v347 = vmul.f32 %v345, 1.442695
  %v348 = vpow.pop %v347
  %v349 = vmul.f32 %v346, 1.442695
  %v350 = vpow.pop %v349
  %v351 = vadd.f32 %v348, 1.0
  %v352 = vadd.f32 %v350, 1.0
  %v353 = vrcp.pop %v351
  %v354 = vmul.f32 1.0, %v353
  %v355 = vrcp.pop %v352
  %v356 = vmul.f32 1.0, %v355
  %v357 = vtanh.pop %v343
  %v358 = vtanh.pop %v344
  %v361 = vrot.slane %v246, 7
  %v362 = vrot.slane %v247, 7
  %v365 = vmul.f32 %v354, %v361
  %v366 = vmul.f32 %v356, %v362
  %369 = vrot.lane.b32.xlu0 %v357, 64
  %v370 = vpop.permute.xlu0 %369
  %371 = vrot.lane.b32.xlu0 %v358, 64
  %v372 = vpop.permute.xlu0 %371
  %v375 = vmul.f32 %v354, %v370
  %v376 = vmul.f32 %v356, %v372
  %379 = vrot.lane.b32.xlu0 %v375, 32
  %v380 = vpop.permute.xlu0 %379
  %381 = vrot.lane.b32.xlu0 %v376, 32
  %v382 = vpop.permute.xlu0 %381
  %v385 = vadd.f32 %v365, %v380
  %v386 = vadd.f32 %v366, %v382
  %v387 = vtanh.pop %v385
  %v388 = vtanh.pop %v386
  %391 = vrot.lane.b32.xlu0 %v387, 64
  %v392 = vpop.permute.xlu0 %391
  %393 = vrot.lane.b32.xlu0 %v388, 64
  %v394 = vpop.permute.xlu0 %393
  %v397 = vmul.f32 %v354, %v392
  %v398 = vmul.f32 %v356, %v394
  %v401 = vrot.slane %v397, 1
  %v402 = vsel %vm263, %v398, %v401
  %403 = vrot.lane.b32.xlu0 %v402, 32
  %v404 = vpop.permute.xlu0 %403
  %v405 = vsel %vm132, %v404, 0
  %407 = vmatprep.subr.mxu0 0.0
  %408 = vmatpush1.msra.mxu0 %v35
  %409 = vmatprep.subr.mxu0 0.0
  %410 = vmatpush1.msra.mxu0 %v36
  %411 = vmatprep.subr.mxu0 0.0
  %412 = vmatpush1.msra.mxu0 %v37
  %413 = vmatprep.subr.mxu0 0.0
  %414 = vmatpush1.msra.mxu0 %v38
  %415 = vmatprep.subr.mxu0 0.0
  %416 = vmatpush1.msra.mxu0 0.0
  %417 = vmatprep.subr.mxu0 0.0
  %418 = vmatpush1.msra.mxu0 0.0
  %419 = vmatprep.subr.mxu0 0.0
  %420 = vmatpush1.msra.mxu0 0.0
  %421 = vmatprep.subr.mxu0 0.0
  %422 = vmatpush1.msra.mxu0 0.0
  %423 = vmatprep.subr.mxu0 0.0
  %424 = vmatpush1.msra.mxu0 0.0
  %425 = vmatprep.subr.mxu0 0.0
  %426 = vmatpush1.msra.mxu0 0.0
  %427 = vmatprep.subr.mxu0 0.0
  %428 = vmatpush1.msra.mxu0 0.0
  %429 = vmatprep.subr.mxu0 0.0
  %430 = vmatpush1.msra.mxu0 0.0
  %431 = vmatprep.subr.mxu0 0.0
  %432 = vmatpush1.msra.mxu0 0.0
  %433 = vmatprep.subr.mxu0 0.0
  %434 = vmatpush1.msra.mxu0 0.0
  %435 = vmatprep.subr.mxu0 0.0
  %436 = vmatpush1.msra.mxu0 0.0
  %437 = vmatprep.subr.mxu0 0.0
  %438 = vmatpush1.msra.mxu0 0.0
  %439 = vmatprep.subr.mxu0 0.0
  %440 = vmatpush1.msra.mxu0 0.0
  %441 = vmatprep.subr.mxu0 0.0
  %442 = vmatpush1.msra.mxu0 0.0
  %443 = vmatprep.subr.mxu0 0.0
  %444 = vmatpush1.msra.mxu0 0.0
  %445 = vmatprep.subr.mxu0 0.0
  %446 = vmatpush1.msra.mxu0 0.0
  %447 = vmatprep.subr.mxu0 0.0
  %448 = vmatpush1.msra.mxu0 0.0
  %449 = vmatprep.subr.mxu0 0.0
  %450 = vmatpush1.msra.mxu0 0.0
  %451 = vmatprep.subr.mxu0 0.0
  %452 = vmatpush1.msra.mxu0 0.0
  %453 = vmatprep.subr.mxu0 0.0
  %454 = vmatpush1.msra.mxu0 0.0
  %455 = vmatprep.subr.mxu0 0.0
  %456 = vmatpush1.msra.mxu0 0.0
  %457 = vmatprep.subr.mxu0 0.0
  %458 = vmatpush1.msra.mxu0 0.0
  %459 = vmatprep.subr.mxu0 0.0
  %460 = vmatpush1.msra.mxu0 0.0
  %461 = vmatprep.subr.mxu0 0.0
  %462 = vmatpush1.msra.mxu0 0.0
  %463 = vmatprep.subr.mxu0 0.0
  %464 = vmatpush1.msra.mxu0 0.0
  %465 = vmatprep.subr.mxu0 0.0
  %466 = vmatpush1.msra.mxu0 0.0
  %467 = vmatprep.subr.mxu0 0.0
  %468 = vmatpush1.msra.mxu0 0.0
  %469 = vmatprep.subr.mxu0 0.0
  %470 = vmatpush1.msra.mxu0 0.0
  %471 = vmatprep.mubr.f32.mxu0 0.0
  %472 = vmatmul.mubr.f32.gmra.mrb[0].mxu0 %v405
  %v473 = vpop.f32.mrb[0].mxu0
  %v474 = vadd.f32 0.0, %v473
  %v475 = vpop.f32.mrb[0].mxu0
  %476 = vdwg.mxu0
  %v478 = vrot.slane %v474, 6
  %v479 = vrot.slane %v474, 7
  %v482 = vadd.f32 %v124, %v478
  %v483 = vadd.f32 %v129, %v479
  %v484 = vxor.u32 %v482, 2147483648
  %v485 = vxor.u32 %v483, 2147483648
  %v486 = vmul.f32 %v484, 1.442695
  %v487 = vpow.pop %v486
  %v488 = vmul.f32 %v485, 1.442695
  %v489 = vpow.pop %v488
  %v490 = vadd.f32 %v487, 1.0
  %v491 = vadd.f32 %v489, 1.0
  %v492 = vrcp.pop %v490
  %v493 = vmul.f32 1.0, %v492
  %v494 = vrcp.pop %v491
  %v495 = vmul.f32 1.0, %v494
  %v496 = vtanh.pop %v482
  %v497 = vtanh.pop %v483
  %v500 = vrot.slane %v385, 7
  %v501 = vrot.slane %v386, 7
  %v504 = vmul.f32 %v493, %v500
  %v505 = vmul.f32 %v495, %v501
  %508 = vrot.lane.b32.xlu0 %v496, 64
  %v509 = vpop.permute.xlu0 %508
  %510 = vrot.lane.b32.xlu0 %v497, 64
  %v511 = vpop.permute.xlu0 %510
  %v514 = vmul.f32 %v493, %v509
  %v515 = vmul.f32 %v495, %v511
  %518 = vrot.lane.b32.xlu0 %v514, 32
  %v519 = vpop.permute.xlu0 %518
  %520 = vrot.lane.b32.xlu0 %v515, 32
  %v521 = vpop.permute.xlu0 %520
  %v524 = vadd.f32 %v504, %v519
  %v525 = vadd.f32 %v505, %v521
  %v526 = vtanh.pop %v524
  %v527 = vtanh.pop %v525
  %530 = vrot.lane.b32.xlu0 %v526, 64
  %v531 = vpop.permute.xlu0 %530
  %532 = vrot.lane.b32.xlu0 %v527, 64
  %v533 = vpop.permute.xlu0 %532
  %v536 = vmul.f32 %v493, %v531
  %v537 = vmul.f32 %v495, %v533
  %v540 = vrot.slane %v536, 2
  %v541 = vrot.slane %v537, 1
  %v542 = vsel %vm263, %v541, %v540
  %543 = vrot.lane.b32.xlu0 %v542, 32
  %v544 = vpop.permute.xlu0 %543
  %v545 = vsel %vm132, %v544, 0
  %547 = vmatprep.subr.mxu0 0.0
  %548 = vmatpush1.msra.mxu0 %v35
  %549 = vmatprep.subr.mxu0 0.0
  %550 = vmatpush1.msra.mxu0 %v36
  %551 = vmatprep.subr.mxu0 0.0
  %552 = vmatpush1.msra.mxu0 %v37
  %553 = vmatprep.subr.mxu0 0.0
  %554 = vmatpush1.msra.mxu0 %v38
  %555 = vmatprep.subr.mxu0 0.0
  %556 = vmatpush1.msra.mxu0 0.0
  %557 = vmatprep.subr.mxu0 0.0
  %558 = vmatpush1.msra.mxu0 0.0
  %559 = vmatprep.subr.mxu0 0.0
  %560 = vmatpush1.msra.mxu0 0.0
  %561 = vmatprep.subr.mxu0 0.0
  %562 = vmatpush1.msra.mxu0 0.0
  %563 = vmatprep.subr.mxu0 0.0
  %564 = vmatpush1.msra.mxu0 0.0
  %565 = vmatprep.subr.mxu0 0.0
  %566 = vmatpush1.msra.mxu0 0.0
  %567 = vmatprep.subr.mxu0 0.0
  %568 = vmatpush1.msra.mxu0 0.0
  %569 = vmatprep.subr.mxu0 0.0
  %570 = vmatpush1.msra.mxu0 0.0
  %571 = vmatprep.subr.mxu0 0.0
  %572 = vmatpush1.msra.mxu0 0.0
  %573 = vmatprep.subr.mxu0 0.0
  %574 = vmatpush1.msra.mxu0 0.0
  %575 = vmatprep.subr.mxu0 0.0
  %576 = vmatpush1.msra.mxu0 0.0
  %577 = vmatprep.subr.mxu0 0.0
  %578 = vmatpush1.msra.mxu0 0.0
  %579 = vmatprep.subr.mxu0 0.0
  %580 = vmatpush1.msra.mxu0 0.0
  %581 = vmatprep.subr.mxu0 0.0
  %582 = vmatpush1.msra.mxu0 0.0
  %583 = vmatprep.subr.mxu0 0.0
  %584 = vmatpush1.msra.mxu0 0.0
  %585 = vmatprep.subr.mxu0 0.0
  %586 = vmatpush1.msra.mxu0 0.0
  %587 = vmatprep.subr.mxu0 0.0
  %588 = vmatpush1.msra.mxu0 0.0
  %589 = vmatprep.subr.mxu0 0.0
  %590 = vmatpush1.msra.mxu0 0.0
  %591 = vmatprep.subr.mxu0 0.0
  %592 = vmatpush1.msra.mxu0 0.0
  %593 = vmatprep.subr.mxu0 0.0
  %594 = vmatpush1.msra.mxu0 0.0
  %595 = vmatprep.subr.mxu0 0.0
  %596 = vmatpush1.msra.mxu0 0.0
  %597 = vmatprep.subr.mxu0 0.0
  %598 = vmatpush1.msra.mxu0 0.0
  %599 = vmatprep.subr.mxu0 0.0
  %600 = vmatpush1.msra.mxu0 0.0
  %601 = vmatprep.subr.mxu0 0.0
  %602 = vmatpush1.msra.mxu0 0.0
  %603 = vmatprep.subr.mxu0 0.0
  %604 = vmatpush1.msra.mxu0 0.0
  %605 = vmatprep.subr.mxu0 0.0
  %606 = vmatpush1.msra.mxu0 0.0
  %607 = vmatprep.subr.mxu0 0.0
  %608 = vmatpush1.msra.mxu0 0.0
  %609 = vmatprep.subr.mxu0 0.0
  %610 = vmatpush1.msra.mxu0 0.0
  %611 = vmatprep.mubr.f32.mxu0 0.0
  %612 = vmatmul.mubr.f32.gmra.mrb[0].mxu0 %v545
  %v613 = vpop.f32.mrb[0].mxu0
  %v614 = vadd.f32 0.0, %v613
  %v615 = vpop.f32.mrb[0].mxu0
  %616 = vdwg.mxu0
  %v618 = vrot.slane %v614, 5
  %v619 = vrot.slane %v614, 6
  %v622 = vadd.f32 %v124, %v618
  %v623 = vadd.f32 %v129, %v619
  %v624 = vxor.u32 %v622, 2147483648
  %v625 = vxor.u32 %v623, 2147483648
  %v626 = vmul.f32 %v624, 1.442695
  %v627 = vpow.pop %v626
  %v628 = vmul.f32 %v625, 1.442695
  %v629 = vpow.pop %v628
  %v630 = vadd.f32 %v627, 1.0
  %v631 = vadd.f32 %v629, 1.0
  %v632 = vrcp.pop %v630
  %v633 = vmul.f32 1.0, %v632
  %v634 = vrcp.pop %v631
  %v635 = vmul.f32 1.0, %v634
  %v636 = vtanh.pop %v622
  %v637 = vtanh.pop %v623
  %v640 = vrot.slane %v524, 7
  %v641 = vrot.slane %v525, 7
  %v644 = vmul.f32 %v633, %v640
  %v645 = vmul.f32 %v635, %v641
  %648 = vrot.lane.b32.xlu0 %v636, 64
  %v649 = vpop.permute.xlu0 %648
  %650 = vrot.lane.b32.xlu0 %v637, 64
  %v651 = vpop.permute.xlu0 %650
  %v654 = vmul.f32 %v633, %v649
  %v655 = vmul.f32 %v635, %v651
  %658 = vrot.lane.b32.xlu0 %v654, 32
  %v659 = vpop.permute.xlu0 %658
  %660 = vrot.lane.b32.xlu0 %v655, 32
  %v661 = vpop.permute.xlu0 %660
  %v664 = vadd.f32 %v644, %v659
  %v665 = vadd.f32 %v645, %v661
  %v666 = vtanh.pop %v664
  %v667 = vtanh.pop %v665
  %670 = vrot.lane.b32.xlu0 %v666, 64
  %v671 = vpop.permute.xlu0 %670
  %672 = vrot.lane.b32.xlu0 %v667, 64
  %v673 = vpop.permute.xlu0 %672
  %v676 = vmul.f32 %v633, %v671
  %v677 = vmul.f32 %v635, %v673
  %v680 = vrot.slane %v676, 3
  %v681 = vrot.slane %v677, 2
  %v682 = vsel %vm263, %v681, %v680
  %683 = vrot.lane.b32.xlu0 %v682, 32
  %v684 = vpop.permute.xlu0 %683
  %v685 = vsel %vm132, %v684, 0
  %687 = vmatprep.subr.mxu0 0.0
  %688 = vmatpush1.msra.mxu0 %v35
  %689 = vmatprep.subr.mxu0 0.0
  %690 = vmatpush1.msra.mxu0 %v36
  %691 = vmatprep.subr.mxu0 0.0
  %692 = vmatpush1.msra.mxu0 %v37
  %693 = vmatprep.subr.mxu0 0.0
  %694 = vmatpush1.msra.mxu0 %v38
  %695 = vmatprep.subr.mxu0 0.0
  %696 = vmatpush1.msra.mxu0 0.0
  %697 = vmatprep.subr.mxu0 0.0
  %698 = vmatpush1.msra.mxu0 0.0
  %699 = vmatprep.subr.mxu0 0.0
  %700 = vmatpush1.msra.mxu0 0.0
  %701 = vmatprep.subr.mxu0 0.0
  %702 = vmatpush1.msra.mxu0 0.0
  %703 = vmatprep.subr.mxu0 0.0
  %704 = vmatpush1.msra.mxu0 0.0
  %705 = vmatprep.subr.mxu0 0.0
  %706 = vmatpush1.msra.mxu0 0.0
  %707 = vmatprep.subr.mxu0 0.0
  %708 = vmatpush1.msra.mxu0 0.0
  %709 = vmatprep.subr.mxu0 0.0
  %710 = vmatpush1.msra.mxu0 0.0
  %711 = vmatprep.subr.mxu0 0.0
  %712 = vmatpush1.msra.mxu0 0.0
  %713 = vmatprep.subr.mxu0 0.0
  %714 = vmatpush1.msra.mxu0 0.0
  %715 = vmatprep.subr.mxu0 0.0
  %716 = vmatpush1.msra.mxu0 0.0
  %717 = vmatprep.subr.mxu0 0.0
  %718 = vmatpush1.msra.mxu0 0.0
  %719 = vmatprep.subr.mxu0 0.0
  %720 = vmatpush1.msra.mxu0 0.0
  %721 = vmatprep.subr.mxu0 0.0
  %722 = vmatpush1.msra.mxu0 0.0
  %723 = vmatprep.subr.mxu0 0.0
  %724 = vmatpush1.msra.mxu0 0.0
  %725 = vmatprep.subr.mxu0 0.0
  %726 = vmatpush1.msra.mxu0 0.0
  %727 = vmatprep.subr.mxu0 0.0
  %728 = vmatpush1.msra.mxu0 0.0
  %729 = vmatprep.subr.mxu0 0.0
  %730 = vmatpush1.msra.mxu0 0.0
  %731 = vmatprep.subr.mxu0 0.0
  %732 = vmatpush1.msra.mxu0 0.0
  %733 = vmatprep.subr.mxu0 0.0
  %734 = vmatpush1.msra.mxu0 0.0
  %735 = vmatprep.subr.mxu0 0.0
  %736 = vmatpush1.msra.mxu0 0.0
  %737 = vmatprep.subr.mxu0 0.0
  %738 = vmatpush1.msra.mxu0 0.0
  %739 = vmatprep.subr.mxu0 0.0
  %740 = vmatpush1.msra.mxu0 0.0
  %741 = vmatprep.subr.mxu0 0.0
  %742 = vmatpush1.msra.mxu0 0.0
  %743 = vmatprep.subr.mxu0 0.0
  %744 = vmatpush1.msra.mxu0 0.0
  %745 = vmatprep.subr.mxu0 0.0
  %746 = vmatpush1.msra.mxu0 0.0
  %747 = vmatprep.subr.mxu0 0.0
  %748 = vmatpush1.msra.mxu0 0.0
  %749 = vmatprep.subr.mxu0 0.0
  %750 = vmatpush1.msra.mxu0 0.0
  %751 = vmatprep.mubr.f32.mxu0 0.0
  %752 = vmatmul.mubr.f32.gmra.mrb[0].mxu0 %v685
  %v753 = vpop.f32.mrb[0].mxu0
  %v754 = vadd.f32 0.0, %v753
  %v755 = vpop.f32.mrb[0].mxu0
  %756 = vdwg.mxu0
  %v758 = vrot.slane %v754, 4
  %v759 = vrot.slane %v754, 5
  %v762 = vadd.f32 %v124, %v758
  %v763 = vadd.f32 %v129, %v759
  %v764 = vxor.u32 %v762, 2147483648
  %v765 = vxor.u32 %v763, 2147483648
  %v766 = vmul.f32 %v764, 1.442695
  %v767 = vpow.pop %v766
  %v768 = vmul.f32 %v765, 1.442695
  %v769 = vpow.pop %v768
  %v770 = vadd.f32 %v767, 1.0
  %v771 = vadd.f32 %v769, 1.0
  %v772 = vrcp.pop %v770
  %v773 = vmul.f32 1.0, %v772
  %v774 = vrcp.pop %v771
  %v775 = vmul.f32 1.0, %v774
  %v776 = vtanh.pop %v762
  %v777 = vtanh.pop %v763
  %v780 = vrot.slane %v664, 7
  %v781 = vrot.slane %v665, 7
  %v784 = vmul.f32 %v773, %v780
  %v785 = vmul.f32 %v775, %v781
  %788 = vrot.lane.b32.xlu0 %v776, 64
  %v789 = vpop.permute.xlu0 %788
  %790 = vrot.lane.b32.xlu0 %v777, 64
  %v791 = vpop.permute.xlu0 %790
  %v794 = vmul.f32 %v773, %v789
  %v795 = vmul.f32 %v775, %v791
  %798 = vrot.lane.b32.xlu0 %v794, 32
  %v799 = vpop.permute.xlu0 %798
  %800 = vrot.lane.b32.xlu0 %v795, 32
  %v801 = vpop.permute.xlu0 %800
  %v804 = vadd.f32 %v784, %v799
  %v805 = vadd.f32 %v785, %v801
  %v806 = vtanh.pop %v804
  %v807 = vtanh.pop %v805
  %810 = vrot.lane.b32.xlu0 %v806, 64
  %v811 = vpop.permute.xlu0 %810
  %812 = vrot.lane.b32.xlu0 %v807, 64
  %v813 = vpop.permute.xlu0 %812
  %v816 = vmul.f32 %v773, %v811
  %v817 = vmul.f32 %v775, %v813
  %v820 = vrot.slane %v816, 4
  %v821 = vrot.slane %v817, 3
  %v822 = vsel %vm263, %v821, %v820
  %823 = vrot.lane.b32.xlu0 %v822, 32
  %v824 = vpop.permute.xlu0 %823
  %v825 = vsel %vm132, %v824, 0
  %827 = vmatprep.subr.mxu0 0.0
  %828 = vmatpush1.msra.mxu0 %v35
  %829 = vmatprep.subr.mxu0 0.0
  %830 = vmatpush1.msra.mxu0 %v36
  %831 = vmatprep.subr.mxu0 0.0
  %832 = vmatpush1.msra.mxu0 %v37
  %833 = vmatprep.subr.mxu0 0.0
  %834 = vmatpush1.msra.mxu0 %v38
  %835 = vmatprep.subr.mxu0 0.0
  %836 = vmatpush1.msra.mxu0 0.0
  %837 = vmatprep.subr.mxu0 0.0
  %838 = vmatpush1.msra.mxu0 0.0
  %839 = vmatprep.subr.mxu0 0.0
  %840 = vmatpush1.msra.mxu0 0.0
  %841 = vmatprep.subr.mxu0 0.0
  %842 = vmatpush1.msra.mxu0 0.0
  %843 = vmatprep.subr.mxu0 0.0
  %844 = vmatpush1.msra.mxu0 0.0
  %845 = vmatprep.subr.mxu0 0.0
  %846 = vmatpush1.msra.mxu0 0.0
  %847 = vmatprep.subr.mxu0 0.0
  %848 = vmatpush1.msra.mxu0 0.0
  %849 = vmatprep.subr.mxu0 0.0
  %850 = vmatpush1.msra.mxu0 0.0
  %851 = vmatprep.subr.mxu0 0.0
  %852 = vmatpush1.msra.mxu0 0.0
  %853 = vmatprep.subr.mxu0 0.0
  %854 = vmatpush1.msra.mxu0 0.0
  %855 = vmatprep.subr.mxu0 0.0
  %856 = vmatpush1.msra.mxu0 0.0
  %857 = vmatprep.subr.mxu0 0.0
  %858 = vmatpush1.msra.mxu0 0.0
  %859 = vmatprep.subr.mxu0 0.0
  %860 = vmatpush1.msra.mxu0 0.0
  %861 = vmatprep.subr.mxu0 0.0
  %862 = vmatpush1.msra.mxu0 0.0
  %863 = vmatprep.subr.mxu0 0.0
  %864 = vmatpush1.msra.mxu0 0.0
  %865 = vmatprep.subr.mxu0 0.0
  %866 = vmatpush1.msra.mxu0 0.0
  %867 = vmatprep.subr.mxu0 0.0
  %868 = vmatpush1.msra.mxu0 0.0
  %869 = vmatprep.subr.mxu0 0.0
  %870 = vmatpush1.msra.mxu0 0.0
  %871 = vmatprep.subr.mxu0 0.0
  %872 = vmatpush1.msra.mxu0 0.0
  %873 = vmatprep.subr.mxu0 0.0
  %874 = vmatpush1.msra.mxu0 0.0
  %875 = vmatprep.subr.mxu0 0.0
  %876 = vmatpush1.msra.mxu0 0.0
  %877 = vmatprep.subr.mxu0 0.0
  %878 = vmatpush1.msra.mxu0 0.0
  %879 = vmatprep.subr.mxu0 0.0
  %880 = vmatpush1.msra.mxu0 0.0
  %881 = vmatprep.subr.mxu0 0.0
  %882 = vmatpush1.msra.mxu0 0.0
  %883 = vmatprep.subr.mxu0 0.0
  %884 = vmatpush1.msra.mxu0 0.0
  %885 = vmatprep.subr.mxu0 0.0
  %886 = vmatpush1.msra.mxu0 0.0
  %887 = vmatprep.subr.mxu0 0.0
  %888 = vmatpush1.msra.mxu0 0.0
  %889 = vmatprep.subr.mxu0 0.0
  %890 = vmatpush1.msra.mxu0 0.0
  %891 = vmatprep.mubr.f32.mxu0 0.0
  %892 = vmatmul.mubr.f32.gmra.mrb[0].mxu0 %v825
  %v893 = vpop.f32.mrb[0].mxu0
  %v894 = vadd.f32 0.0, %v893
  %v895 = vpop.f32.mrb[0].mxu0
  %896 = vdwg.mxu0
  %v898 = vrot.slane %v894, 3
  %v899 = vrot.slane %v894, 4
  %v902 = vadd.f32 %v124, %v898
  %v903 = vadd.f32 %v129, %v899
  %v904 = vxor.u32 %v902, 2147483648
  %v905 = vxor.u32 %v903, 2147483648
  %v906 = vmul.f32 %v904, 1.442695
  %v907 = vpow.pop %v906
  %v908 = vmul.f32 %v905, 1.442695
  %v909 = vpow.pop %v908
  %v910 = vadd.f32 %v907, 1.0
  %v911 = vadd.f32 %v909, 1.0
  %v912 = vrcp.pop %v910
  %v913 = vmul.f32 1.0, %v912
  %v914 = vrcp.pop %v911
  %v915 = vmul.f32 1.0, %v914
  %v916 = vtanh.pop %v902
  %v917 = vtanh.pop %v903
  %v920 = vrot.slane %v804, 7
  %v921 = vrot.slane %v805, 7
  %v924 = vmul.f32 %v913, %v920
  %v925 = vmul.f32 %v915, %v921
  %928 = vrot.lane.b32.xlu0 %v916, 64
  %v929 = vpop.permute.xlu0 %928
  %930 = vrot.lane.b32.xlu0 %v917, 64
  %v931 = vpop.permute.xlu0 %930
  %v934 = vmul.f32 %v913, %v929
  %v935 = vmul.f32 %v915, %v931
  %938 = vrot.lane.b32.xlu0 %v934, 32
  %v939 = vpop.permute.xlu0 %938
  %940 = vrot.lane.b32.xlu0 %v935, 32
  %v941 = vpop.permute.xlu0 %940
  %v944 = vadd.f32 %v924, %v939
  %v945 = vadd.f32 %v925, %v941
  %v946 = vtanh.pop %v944
  %v947 = vtanh.pop %v945
  %950 = vrot.lane.b32.xlu0 %v946, 64
  %v951 = vpop.permute.xlu0 %950
  %952 = vrot.lane.b32.xlu0 %v947, 64
  %v953 = vpop.permute.xlu0 %952
  %v956 = vmul.f32 %v913, %v951
  %v957 = vmul.f32 %v915, %v953
  %v960 = vrot.slane %v956, 5
  %v961 = vrot.slane %v957, 4
  %v962 = vsel %vm263, %v961, %v960
  %963 = vrot.lane.b32.xlu0 %v962, 32
  %v964 = vpop.permute.xlu0 %963
  %v965 = vsel %vm132, %v964, 0
  %967 = vmatprep.subr.mxu0 0.0
  %968 = vmatpush1.msra.mxu0 %v35
  %969 = vmatprep.subr.mxu0 0.0
  %970 = vmatpush1.msra.mxu0 %v36
  %971 = vmatprep.subr.mxu0 0.0
  %972 = vmatpush1.msra.mxu0 %v37
  %973 = vmatprep.subr.mxu0 0.0
  %974 = vmatpush1.msra.mxu0 %v38
  %975 = vmatprep.subr.mxu0 0.0
  %976 = vmatpush1.msra.mxu0 0.0
  %977 = vmatprep.subr.mxu0 0.0
  %978 = vmatpush1.msra.mxu0 0.0
  %979 = vmatprep.subr.mxu0 0.0
  %980 = vmatpush1.msra.mxu0 0.0
  %981 = vmatprep.subr.mxu0 0.0
  %982 = vmatpush1.msra.mxu0 0.0
  %983 = vmatprep.subr.mxu0 0.0
  %984 = vmatpush1.msra.mxu0 0.0
  %985 = vmatprep.subr.mxu0 0.0
  %986 = vmatpush1.msra.mxu0 0.0
  %987 = vmatprep.subr.mxu0 0.0
  %988 = vmatpush1.msra.mxu0 0.0
  %989 = vmatprep.subr.mxu0 0.0
  %990 = vmatpush1.msra.mxu0 0.0
  %991 = vmatprep.subr.mxu0 0.0
  %992 = vmatpush1.msra.mxu0 0.0
  %993 = vmatprep.subr.mxu0 0.0
  %994 = vmatpush1.msra.mxu0 0.0
  %995 = vmatprep.subr.mxu0 0.0
  %996 = vmatpush1.msra.mxu0 0.0
  %997 = vmatprep.subr.mxu0 0.0
  %998 = vmatpush1.msra.mxu0 0.0
  %999 = vmatprep.subr.mxu0 0.0
  %1000 = vmatpush1.msra.mxu0 0.0
  %1001 = vmatprep.subr.mxu0 0.0
  %1002 = vmatpush1.msra.mxu0 0.0
  %1003 = vmatprep.subr.mxu0 0.0
  %1004 = vmatpush1.msra.mxu0 0.0
  %1005 = vmatprep.subr.mxu0 0.0
  %1006 = vmatpush1.msra.mxu0 0.0
  %1007 = vmatprep.subr.mxu0 0.0
  %1008 = vmatpush1.msra.mxu0 0.0
  %1009 = vmatprep.subr.mxu0 0.0
  %1010 = vmatpush1.msra.mxu0 0.0
  %1011 = vmatprep.subr.mxu0 0.0
  %1012 = vmatpush1.msra.mxu0 0.0
  %1013 = vmatprep.subr.mxu0 0.0
  %1014 = vmatpush1.msra.mxu0 0.0
  %1015 = vmatprep.subr.mxu0 0.0
  %1016 = vmatpush1.msra.mxu0 0.0
  %1017 = vmatprep.subr.mxu0 0.0
  %1018 = vmatpush1.msra.mxu0 0.0
  %1019 = vmatprep.subr.mxu0 0.0
  %1020 = vmatpush1.msra.mxu0 0.0
  %1021 = vmatprep.subr.mxu0 0.0
  %1022 = vmatpush1.msra.mxu0 0.0
  %1023 = vmatprep.subr.mxu0 0.0
  %1024 = vmatpush1.msra.mxu0 0.0
  %1025 = vmatprep.subr.mxu0 0.0
  %1026 = vmatpush1.msra.mxu0 0.0
  %1027 = vmatprep.subr.mxu0 0.0
  %1028 = vmatpush1.msra.mxu0 0.0
  %1029 = vmatprep.subr.mxu0 0.0
  %1030 = vmatpush1.msra.mxu0 0.0
  %1031 = vmatprep.mubr.f32.mxu0 0.0
  %1032 = vmatmul.mubr.f32.gmra.mrb[0].mxu0 %v965
  %v1033 = vpop.f32.mrb[0].mxu0
  %v1034 = vadd.f32 0.0, %v1033
  %v1035 = vpop.f32.mrb[0].mxu0
  %1036 = vdwg.mxu0
  %v1038 = vrot.slane %v1034, 2
  %v1039 = vrot.slane %v1034, 3
  %v1042 = vadd.f32 %v124, %v1038
  %v1043 = vadd.f32 %v129, %v1039
  %v1044 = vxor.u32 %v1042, 2147483648
  %v1045 = vxor.u32 %v1043, 2147483648
  %v1046 = vmul.f32 %v1044, 1.442695
  %v1047 = vpow.pop %v1046
  %v1048 = vmul.f32 %v1045, 1.442695
  %v1049 = vpow.pop %v1048
  %v1050 = vadd.f32 %v1047, 1.0
  %v1051 = vadd.f32 %v1049, 1.0
  %v1052 = vrcp.pop %v1050
  %v1053 = vmul.f32 1.0, %v1052
  %v1054 = vrcp.pop %v1051
  %v1055 = vmul.f32 1.0, %v1054
  %v1056 = vtanh.pop %v1042
  %v1057 = vtanh.pop %v1043
  %v1060 = vrot.slane %v944, 7
  %v1061 = vrot.slane %v945, 7
  %v1064 = vmul.f32 %v1053, %v1060
  %v1065 = vmul.f32 %v1055, %v1061
  %1068 = vrot.lane.b32.xlu0 %v1056, 64
  %v1069 = vpop.permute.xlu0 %1068
  %1070 = vrot.lane.b32.xlu0 %v1057, 64
  %v1071 = vpop.permute.xlu0 %1070
  %v1074 = vmul.f32 %v1053, %v1069
  %v1075 = vmul.f32 %v1055, %v1071
  %1078 = vrot.lane.b32.xlu0 %v1074, 32
  %v1079 = vpop.permute.xlu0 %1078
  %1080 = vrot.lane.b32.xlu0 %v1075, 32
  %v1081 = vpop.permute.xlu0 %1080
  %v1084 = vadd.f32 %v1064, %v1079
  %v1085 = vadd.f32 %v1065, %v1081
  %v1086 = vtanh.pop %v1084
  %v1087 = vtanh.pop %v1085
  %1090 = vrot.lane.b32.xlu0 %v1086, 64
  %v1091 = vpop.permute.xlu0 %1090
  %1092 = vrot.lane.b32.xlu0 %v1087, 64
  %v1093 = vpop.permute.xlu0 %1092
  %v1096 = vmul.f32 %v1053, %v1091
  %v1097 = vmul.f32 %v1055, %v1093
  %v1100 = vrot.slane %v1096, 6
  %v1101 = vrot.slane %v1097, 5
  %v1102 = vsel %vm263, %v1101, %v1100
  %1103 = vrot.lane.b32.xlu0 %v1102, 32
  %v1104 = vpop.permute.xlu0 %1103
  %v1105 = vsel %vm132, %v1104, 0
  %1107 = vmatprep.subr.mxu0 0.0
  %1108 = vmatpush1.msra.mxu0 %v35
  %1109 = vmatprep.subr.mxu0 0.0
  %1110 = vmatpush1.msra.mxu0 %v36
  %1111 = vmatprep.subr.mxu0 0.0
  %1112 = vmatpush1.msra.mxu0 %v37
  %1113 = vmatprep.subr.mxu0 0.0
  %1114 = vmatpush1.msra.mxu0 %v38
  %1115 = vmatprep.subr.mxu0 0.0
  %1116 = vmatpush1.msra.mxu0 0.0
  %1117 = vmatprep.subr.mxu0 0.0
  %1118 = vmatpush1.msra.mxu0 0.0
  %1119 = vmatprep.subr.mxu0 0.0
  %1120 = vmatpush1.msra.mxu0 0.0
  %1121 = vmatprep.subr.mxu0 0.0
  %1122 = vmatpush1.msra.mxu0 0.0
  %1123 = vmatprep.subr.mxu0 0.0
  %1124 = vmatpush1.msra.mxu0 0.0
  %1125 = vmatprep.subr.mxu0 0.0
  %1126 = vmatpush1.msra.mxu0 0.0
  %1127 = vmatprep.subr.mxu0 0.0
  %1128 = vmatpush1.msra.mxu0 0.0
  %1129 = vmatprep.subr.mxu0 0.0
  %1130 = vmatpush1.msra.mxu0 0.0
  %1131 = vmatprep.subr.mxu0 0.0
  %1132 = vmatpush1.msra.mxu0 0.0
  %1133 = vmatprep.subr.mxu0 0.0
  %1134 = vmatpush1.msra.mxu0 0.0
  %1135 = vmatprep.subr.mxu0 0.0
  %1136 = vmatpush1.msra.mxu0 0.0
  %1137 = vmatprep.subr.mxu0 0.0
  %1138 = vmatpush1.msra.mxu0 0.0
  %1139 = vmatprep.subr.mxu0 0.0
  %1140 = vmatpush1.msra.mxu0 0.0
  %1141 = vmatprep.subr.mxu0 0.0
  %1142 = vmatpush1.msra.mxu0 0.0
  %1143 = vmatprep.subr.mxu0 0.0
  %1144 = vmatpush1.msra.mxu0 0.0
  %1145 = vmatprep.subr.mxu0 0.0
  %1146 = vmatpush1.msra.mxu0 0.0
  %1147 = vmatprep.subr.mxu0 0.0
  %1148 = vmatpush1.msra.mxu0 0.0
  %1149 = vmatprep.subr.mxu0 0.0
  %1150 = vmatpush1.msra.mxu0 0.0
  %1151 = vmatprep.subr.mxu0 0.0
  %1152 = vmatpush1.msra.mxu0 0.0
  %1153 = vmatprep.subr.mxu0 0.0
  %1154 = vmatpush1.msra.mxu0 0.0
  %1155 = vmatprep.subr.mxu0 0.0
  %1156 = vmatpush1.msra.mxu0 0.0
  %1157 = vmatprep.subr.mxu0 0.0
  %1158 = vmatpush1.msra.mxu0 0.0
  %1159 = vmatprep.subr.mxu0 0.0
  %1160 = vmatpush1.msra.mxu0 0.0
  %1161 = vmatprep.subr.mxu0 0.0
  %1162 = vmatpush1.msra.mxu0 0.0
  %1163 = vmatprep.subr.mxu0 0.0
  %1164 = vmatpush1.msra.mxu0 0.0
  %1165 = vmatprep.subr.mxu0 0.0
  %1166 = vmatpush1.msra.mxu0 0.0
  %1167 = vmatprep.subr.mxu0 0.0
  %1168 = vmatpush1.msra.mxu0 0.0
  %1169 = vmatprep.subr.mxu0 0.0
  %1170 = vmatpush1.msra.mxu0 0.0
  %1171 = vmatprep.mubr.f32.mxu0 0.0
  %1172 = vmatmul.mubr.f32.gmra.mrb[0].mxu0 %v1105
  %v1173 = vpop.f32.mrb[0].mxu0
  %v1174 = vadd.f32 0.0, %v1173
  %v1175 = vpop.f32.mrb[0].mxu0
  %1176 = vdwg.mxu0
  %v1178 = vrot.slane %v1174, 1
  %v1179 = vrot.slane %v1174, 2
  %v1182 = vadd.f32 %v124, %v1178
  %v1183 = vadd.f32 %v129, %v1179
  %v1184 = vxor.u32 %v1182, 2147483648
  %v1185 = vxor.u32 %v1183, 2147483648
  %v1186 = vmul.f32 %v1184, 1.442695
  %v1187 = vpow.pop %v1186
  %v1188 = vmul.f32 %v1185, 1.442695
  %v1189 = vpow.pop %v1188
  %v1190 = vadd.f32 %v1187, 1.0
  %v1191 = vadd.f32 %v1189, 1.0
  %v1192 = vrcp.pop %v1190
  %v1193 = vmul.f32 1.0, %v1192
  %v1194 = vrcp.pop %v1191
  %v1195 = vmul.f32 1.0, %v1194
  %v1196 = vtanh.pop %v1182
  %v1197 = vtanh.pop %v1183
  %v1200 = vrot.slane %v1084, 7
  %v1201 = vrot.slane %v1085, 7
  %v1204 = vmul.f32 %v1193, %v1200
  %v1205 = vmul.f32 %v1195, %v1201
  %1208 = vrot.lane.b32.xlu0 %v1196, 64
  %v1209 = vpop.permute.xlu0 %1208
  %1210 = vrot.lane.b32.xlu0 %v1197, 64
  %v1211 = vpop.permute.xlu0 %1210
  %v1214 = vmul.f32 %v1193, %v1209
  %v1215 = vmul.f32 %v1195, %v1211
  %1218 = vrot.lane.b32.xlu0 %v1214, 32
  %v1219 = vpop.permute.xlu0 %1218
  %1220 = vrot.lane.b32.xlu0 %v1215, 32
  %v1221 = vpop.permute.xlu0 %1220
  %v1224 = vadd.f32 %v1204, %v1219
  %v1225 = vadd.f32 %v1205, %v1221
  %v1226 = vtanh.pop %v1224
  %v1227 = vtanh.pop %v1225
  %1230 = vrot.lane.b32.xlu0 %v1226, 64
  %v1231 = vpop.permute.xlu0 %1230
  %1232 = vrot.lane.b32.xlu0 %v1227, 64
  %v1233 = vpop.permute.xlu0 %1232
  %v1236 = vmul.f32 %v1193, %v1231
  %v1237 = vmul.f32 %v1195, %v1233
  %vm1238 = vcmask 1040384
  %v1239 = vsel %vm1238, %v258, %v397
  %v1240 = vsel %vm1238, %v259, %v398
  %v1241 = vsel %vm53, %v1239, %v536
  %v1242 = vsel %vm53, %v1240, %v537
  %vm1243 = vcmask 1042432
  %v1244 = vsel %vm1243, %v1241, %v676
  %v1245 = vsel %vm1243, %v1242, %v677
  %vm1246 = vcmask 1043456
  %v1247 = vsel %vm1246, %v1244, %v816
  %v1248 = vsel %vm1246, %v1245, %v817
  %vm1249 = vcmask 1044480
  %v1250 = vsel %vm1249, %v1247, %v956
  %v1251 = vsel %vm1249, %v1248, %v957
  %vm1252 = vcmask 1045504
  %v1253 = vsel %vm1252, %v1250, %v1096
  %v1254 = vsel %vm1252, %v1251, %v1097
  %vm1255 = vcmask 1046528
  %v1256 = vsel %vm1255, %v1253, %v1236
  %v1257 = vsel %vm1255, %v1254, %v1237
  %v1258 = vld [vmem:[%s4] sm:$0xff]
  %v1259 = vld [vmem:[%s4 + $0x8] sm:$0xff]
  %v1260 = vld [vmem:[%s4 + $0x10] sm:$0xff]
  %v1261 = vld [vmem:[%s4 + $0x18] sm:$0xff]
  %v1262 = vld [vmem:[%s5] sm:$0xff]
  %v1263 = vld [vmem:[%s5 + $0x8] sm:$0xff]
  %v1264 = vld [vmem:[%s5 + $0x10] sm:$0xff]
  %v1265 = vld [vmem:[%s5 + $0x18] sm:$0xff]
  %v1266 = vld [vmem:[%s6] sm:$0x1]
  %v1268 = vlaneseq
  %v1269 = vshrl.u32 %v1268, 7
  %v1270 = vsub.s32 0, %v1269
  %v1271 = vrot.slane %v1266, %v1270
  %1275 = vrot.lane.b32.xlu0 %v1256, 32
  %v1276 = vpop.permute.xlu0 %1275
  %1277 = vrot.lane.b32.xlu0 %v1257, 32
  %v1278 = vpop.permute.xlu0 %1277
  %v1279 = vsel %vm132, %v1276, 0
  %v1281 = vsel %vm132, %v1278, 0
  %1283 = vmatprep.subr.mxu0 0.0
  %1284 = vmatpush1.msra.mxu0 %v1258
  %1285 = vmatprep.subr.mxu0 0.0
  %1286 = vmatpush1.msra.mxu0 %v1259
  %1287 = vmatprep.subr.mxu0 0.0
  %1288 = vmatpush1.msra.mxu0 %v1260
  %1289 = vmatprep.subr.mxu0 0.0
  %1290 = vmatpush1.msra.mxu0 %v1261
  %1291 = vmatprep.subr.mxu0 0.0
  %1292 = vmatpush1.msra.mxu0 0.0
  %1293 = vmatprep.subr.mxu0 0.0
  %1294 = vmatpush1.msra.mxu0 0.0
  %1295 = vmatprep.subr.mxu0 0.0
  %1296 = vmatpush1.msra.mxu0 0.0
  %1297 = vmatprep.subr.mxu0 0.0
  %1298 = vmatpush1.msra.mxu0 0.0
  %1299 = vmatprep.subr.mxu0 0.0
  %1300 = vmatpush1.msra.mxu0 0.0
  %1301 = vmatprep.subr.mxu0 0.0
  %1302 = vmatpush1.msra.mxu0 0.0
  %1303 = vmatprep.subr.mxu0 0.0
  %1304 = vmatpush1.msra.mxu0 0.0
  %1305 = vmatprep.subr.mxu0 0.0
  %1306 = vmatpush1.msra.mxu0 0.0
  %1307 = vmatprep.subr.mxu0 0.0
  %1308 = vmatpush1.msra.mxu0 0.0
  %1309 = vmatprep.subr.mxu0 0.0
  %1310 = vmatpush1.msra.mxu0 0.0
  %1311 = vmatprep.subr.mxu0 0.0
  %1312 = vmatpush1.msra.mxu0 0.0
  %1313 = vmatprep.subr.mxu0 0.0
  %1314 = vmatpush1.msra.mxu0 0.0
  %1315 = vmatprep.subr.mxu0 0.0
  %1316 = vmatpush1.msra.mxu0 0.0
  %1317 = vmatprep.subr.mxu0 0.0
  %1318 = vmatpush1.msra.mxu0 0.0
  %1319 = vmatprep.subr.mxu0 0.0
  %1320 = vmatpush1.msra.mxu0 0.0
  %1321 = vmatprep.subr.mxu0 0.0
  %1322 = vmatpush1.msra.mxu0 0.0
  %1323 = vmatprep.subr.mxu0 0.0
  %1324 = vmatpush1.msra.mxu0 0.0
  %1325 = vmatprep.subr.mxu0 0.0
  %1326 = vmatpush1.msra.mxu0 0.0
  %1327 = vmatprep.subr.mxu0 0.0
  %1328 = vmatpush1.msra.mxu0 0.0
  %1329 = vmatprep.subr.mxu0 0.0
  %1330 = vmatpush1.msra.mxu0 0.0
  %1331 = vmatprep.subr.mxu0 0.0
  %1332 = vmatpush1.msra.mxu0 0.0
  %1333 = vmatprep.subr.mxu0 0.0
  %1334 = vmatpush1.msra.mxu0 0.0
  %1335 = vmatprep.subr.mxu0 0.0
  %1336 = vmatpush1.msra.mxu0 0.0
  %1337 = vmatprep.subr.mxu0 0.0
  %1338 = vmatpush1.msra.mxu0 0.0
  %1339 = vmatprep.subr.mxu0 0.0
  %1340 = vmatpush1.msra.mxu0 0.0
  %1341 = vmatprep.subr.mxu0 0.0
  %1342 = vmatpush1.msra.mxu0 0.0
  %1343 = vmatprep.subr.mxu0 0.0
  %1344 = vmatpush1.msra.mxu0 0.0
  %1345 = vmatprep.subr.mxu0 0.0
  %1346 = vmatpush1.msra.mxu0 0.0
  %1347 = vmatprep.mubr.f32.mxu0 0.0
  %1348 = vmatmul.mubr.f32.gmra.mrb[0].mxu0 %v1279
  %v1349 = vpop.f32.mrb[0].mxu0
  %v1350 = vadd.f32 %v1271, %v1349
  %v1351 = vpop.f32.mrb[0].mxu0
  %1352 = vmatprep.mubr.f32.mxu0 0.0
  %1353 = vmatmul.mubr.f32.gmra.mrb[0].mxu0 %v1281
  %v1354 = vpop.f32.mrb[0].mxu0
  %v1355 = vadd.f32 %v1271, %v1354
  %v1356 = vpop.f32.mrb[0].mxu0
  %1357 = vdwg.mxu0
  %1358 = vmatprep.subr.mxu0 0.0
  %1359 = vmatpush1.msra.mxu0 %v1262
  %1360 = vmatprep.subr.mxu0 0.0
  %1361 = vmatpush1.msra.mxu0 %v1263
  %1362 = vmatprep.subr.mxu0 0.0
  %1363 = vmatpush1.msra.mxu0 %v1264
  %1364 = vmatprep.subr.mxu0 0.0
  %1365 = vmatpush1.msra.mxu0 %v1265
  %1366 = vmatprep.subr.mxu0 0.0
  %1367 = vmatpush1.msra.mxu0 0.0
  %1368 = vmatprep.subr.mxu0 0.0
  %1369 = vmatpush1.msra.mxu0 0.0
  %1370 = vmatprep.subr.mxu0 0.0
  %1371 = vmatpush1.msra.mxu0 0.0
  %1372 = vmatprep.subr.mxu0 0.0
  %1373 = vmatpush1.msra.mxu0 0.0
  %1374 = vmatprep.subr.mxu0 0.0
  %1375 = vmatpush1.msra.mxu0 0.0
  %1376 = vmatprep.subr.mxu0 0.0
  %1377 = vmatpush1.msra.mxu0 0.0
  %1378 = vmatprep.subr.mxu0 0.0
  %1379 = vmatpush1.msra.mxu0 0.0
  %1380 = vmatprep.subr.mxu0 0.0
  %1381 = vmatpush1.msra.mxu0 0.0
  %1382 = vmatprep.subr.mxu0 0.0
  %1383 = vmatpush1.msra.mxu0 0.0
  %1384 = vmatprep.subr.mxu0 0.0
  %1385 = vmatpush1.msra.mxu0 0.0
  %1386 = vmatprep.subr.mxu0 0.0
  %1387 = vmatpush1.msra.mxu0 0.0
  %1388 = vmatprep.subr.mxu0 0.0
  %1389 = vmatpush1.msra.mxu0 0.0
  %1390 = vmatprep.subr.mxu0 0.0
  %1391 = vmatpush1.msra.mxu0 0.0
  %1392 = vmatprep.subr.mxu0 0.0
  %1393 = vmatpush1.msra.mxu0 0.0
  %1394 = vmatprep.subr.mxu0 0.0
  %1395 = vmatpush1.msra.mxu0 0.0
  %1396 = vmatprep.subr.mxu0 0.0
  %1397 = vmatpush1.msra.mxu0 0.0
  %1398 = vmatprep.subr.mxu0 0.0
  %1399 = vmatpush1.msra.mxu0 0.0
  %1400 = vmatprep.subr.mxu0 0.0
  %1401 = vmatpush1.msra.mxu0 0.0
  %1402 = vmatprep.subr.mxu0 0.0
  %1403 = vmatpush1.msra.mxu0 0.0
  %1404 = vmatprep.subr.mxu0 0.0
  %1405 = vmatpush1.msra.mxu0 0.0
  %1406 = vmatprep.subr.mxu0 0.0
  %1407 = vmatpush1.msra.mxu0 0.0
  %1408 = vmatprep.subr.mxu0 0.0
  %1409 = vmatpush1.msra.mxu0 0.0
  %1410 = vmatprep.subr.mxu0 0.0
  %1411 = vmatpush1.msra.mxu0 0.0
  %1412 = vmatprep.subr.mxu0 0.0
  %1413 = vmatpush1.msra.mxu0 0.0
  %1414 = vmatprep.subr.mxu0 0.0
  %1415 = vmatpush1.msra.mxu0 0.0
  %1416 = vmatprep.subr.mxu0 0.0
  %1417 = vmatpush1.msra.mxu0 0.0
  %1418 = vmatprep.subr.mxu0 0.0
  %1419 = vmatpush1.msra.mxu0 0.0
  %1420 = vmatprep.subr.mxu0 0.0
  %1421 = vmatpush1.msra.mxu0 0.0
  %1422 = vmatprep.mubr.f32.mxu0 0.0
  %1423 = vmatmul.mubr.f32.gmra.mrb[0].mxu0 %v134
  %v1424 = vpop.f32.mrb[0].mxu0
  %v1425 = vadd.f32 0.0, %v1424
  %v1426 = vpop.f32.mrb[0].mxu0
  %1427 = vdwg.mxu0
  %v1429 = vrot.slane %v1425, 1
  %v1432 = vadd.f32 %v1350, %v1425
  %v1433 = vadd.f32 %v1355, %v1429
  %v1434 = vxor.u32 %v1432, 2147483648
  %v1435 = vxor.u32 %v1433, 2147483648
  %v1436 = vmul.f32 %v1434, 1.442695
  %v1437 = vpow.pop %v1436
  %v1438 = vmul.f32 %v1435, 1.442695
  %v1439 = vpow.pop %v1438
  %v1440 = vadd.f32 %v1437, 1.0
  %v1441 = vadd.f32 %v1439, 1.0
  %v1442 = vrcp.pop %v1440
  %v1443 = vmul.f32 1.0, %v1442
  %v1444 = vrcp.pop %v1441
  %v1445 = vmul.f32 1.0, %v1444
  %v1446 = vtanh.pop %v1432
  %v1447 = vtanh.pop %v1433
  %v1448 = vmul.f32 %v1443, 0.0
  %v1449 = vmul.f32 %v1445, 0.0
  %1452 = vrot.lane.b32.xlu0 %v1446, 64
  %v1453 = vpop.permute.xlu0 %1452
  %1454 = vrot.lane.b32.xlu0 %v1447, 64
  %v1455 = vpop.permute.xlu0 %1454
  %v1458 = vmul.f32 %v1443, %v1453
  %v1459 = vmul.f32 %v1445, %v1455
  %1462 = vrot.lane.b32.xlu0 %v1458, 32
  %v1463 = vpop.permute.xlu0 %1462
  %1464 = vrot.lane.b32.xlu0 %v1459, 32
  %v1465 = vpop.permute.xlu0 %1464
  %v1468 = vadd.f32 %v1448, %v1463
  %v1469 = vadd.f32 %v1449, %v1465
  %v1470 = vtanh.pop %v1468
  %v1471 = vtanh.pop %v1469
  %1474 = vrot.lane.b32.xlu0 %v1470, 64
  %v1475 = vpop.permute.xlu0 %1474
  %1476 = vrot.lane.b32.xlu0 %v1471, 64
  %v1477 = vpop.permute.xlu0 %1476
  %v1480 = vmul.f32 %v1443, %v1475
  %v1481 = vmul.f32 %v1445, %v1477
  %v1484 = vrot.slane %v1481, 7
  %v1485 = vsel %vm263, %v1484, %v1480
  %1486 = vrot.lane.b32.xlu0 %v1485, 32
  %v1487 = vpop.permute.xlu0 %1486
  %v1488 = vsel %vm132, %v1487, 0
  %1490 = vmatprep.subr.mxu0 0.0
  %1491 = vmatpush1.msra.mxu0 %v1262
  %1492 = vmatprep.subr.mxu0 0.0
  %1493 = vmatpush1.msra.mxu0 %v1263
  %1494 = vmatprep.subr.mxu0 0.0
  %1495 = vmatpush1.msra.mxu0 %v1264
  %1496 = vmatprep.subr.mxu0 0.0
  %1497 = vmatpush1.msra.mxu0 %v1265
  %1498 = vmatprep.subr.mxu0 0.0
  %1499 = vmatpush1.msra.mxu0 0.0
  %1500 = vmatprep.subr.mxu0 0.0
  %1501 = vmatpush1.msra.mxu0 0.0
  %1502 = vmatprep.subr.mxu0 0.0
  %1503 = vmatpush1.msra.mxu0 0.0
  %1504 = vmatprep.subr.mxu0 0.0
  %1505 = vmatpush1.msra.mxu0 0.0
  %1506 = vmatprep.subr.mxu0 0.0
  %1507 = vmatpush1.msra.mxu0 0.0
  %1508 = vmatprep.subr.mxu0 0.0
  %1509 = vmatpush1.msra.mxu0 0.0
  %1510 = vmatprep.subr.mxu0 0.0
  %1511 = vmatpush1.msra.mxu0 0.0
  %1512 = vmatprep.subr.mxu0 0.0
  %1513 = vmatpush1.msra.mxu0 0.0
  %1514 = vmatprep.subr.mxu0 0.0
  %1515 = vmatpush1.msra.mxu0 0.0
  %1516 = vmatprep.subr.mxu0 0.0
  %1517 = vmatpush1.msra.mxu0 0.0
  %1518 = vmatprep.subr.mxu0 0.0
  %1519 = vmatpush1.msra.mxu0 0.0
  %1520 = vmatprep.subr.mxu0 0.0
  %1521 = vmatpush1.msra.mxu0 0.0
  %1522 = vmatprep.subr.mxu0 0.0
  %1523 = vmatpush1.msra.mxu0 0.0
  %1524 = vmatprep.subr.mxu0 0.0
  %1525 = vmatpush1.msra.mxu0 0.0
  %1526 = vmatprep.subr.mxu0 0.0
  %1527 = vmatpush1.msra.mxu0 0.0
  %1528 = vmatprep.subr.mxu0 0.0
  %1529 = vmatpush1.msra.mxu0 0.0
  %1530 = vmatprep.subr.mxu0 0.0
  %1531 = vmatpush1.msra.mxu0 0.0
  %1532 = vmatprep.subr.mxu0 0.0
  %1533 = vmatpush1.msra.mxu0 0.0
  %1534 = vmatprep.subr.mxu0 0.0
  %1535 = vmatpush1.msra.mxu0 0.0
  %1536 = vmatprep.subr.mxu0 0.0
  %1537 = vmatpush1.msra.mxu0 0.0
  %1538 = vmatprep.subr.mxu0 0.0
  %1539 = vmatpush1.msra.mxu0 0.0
  %1540 = vmatprep.subr.mxu0 0.0
  %1541 = vmatpush1.msra.mxu0 0.0
  %1542 = vmatprep.subr.mxu0 0.0
  %1543 = vmatpush1.msra.mxu0 0.0
  %1544 = vmatprep.subr.mxu0 0.0
  %1545 = vmatpush1.msra.mxu0 0.0
  %1546 = vmatprep.subr.mxu0 0.0
  %1547 = vmatpush1.msra.mxu0 0.0
  %1548 = vmatprep.subr.mxu0 0.0
  %1549 = vmatpush1.msra.mxu0 0.0
  %1550 = vmatprep.subr.mxu0 0.0
  %1551 = vmatpush1.msra.mxu0 0.0
  %1552 = vmatprep.subr.mxu0 0.0
  %1553 = vmatpush1.msra.mxu0 0.0
  %1554 = vmatprep.mubr.f32.mxu0 0.0
  %1555 = vmatmul.mubr.f32.gmra.mrb[0].mxu0 %v1488
  %v1556 = vpop.f32.mrb[0].mxu0
  %v1557 = vadd.f32 0.0, %v1556
  %v1558 = vpop.f32.mrb[0].mxu0
  %1559 = vdwg.mxu0
  %v1561 = vrot.slane %v1557, 7
  %v1564 = vadd.f32 %v1350, %v1561
  %v1565 = vadd.f32 %v1355, %v1557
  %v1566 = vxor.u32 %v1564, 2147483648
  %v1567 = vxor.u32 %v1565, 2147483648
  %v1568 = vmul.f32 %v1566, 1.442695
  %v1569 = vpow.pop %v1568
  %v1570 = vmul.f32 %v1567, 1.442695
  %v1571 = vpow.pop %v1570
  %v1572 = vadd.f32 %v1569, 1.0
  %v1573 = vadd.f32 %v1571, 1.0
  %v1574 = vrcp.pop %v1572
  %v1575 = vmul.f32 1.0, %v1574
  %v1576 = vrcp.pop %v1573
  %v1577 = vmul.f32 1.0, %v1576
  %v1578 = vtanh.pop %v1564
  %v1579 = vtanh.pop %v1565
  %v1582 = vrot.slane %v1468, 7
  %v1583 = vrot.slane %v1469, 7
  %v1586 = vmul.f32 %v1575, %v1582
  %v1587 = vmul.f32 %v1577, %v1583
  %1590 = vrot.lane.b32.xlu0 %v1578, 64
  %v1591 = vpop.permute.xlu0 %1590
  %1592 = vrot.lane.b32.xlu0 %v1579, 64
  %v1593 = vpop.permute.xlu0 %1592
  %v1596 = vmul.f32 %v1575, %v1591
  %v1597 = vmul.f32 %v1577, %v1593
  %1600 = vrot.lane.b32.xlu0 %v1596, 32
  %v1601 = vpop.permute.xlu0 %1600
  %1602 = vrot.lane.b32.xlu0 %v1597, 32
  %v1603 = vpop.permute.xlu0 %1602
  %v1606 = vadd.f32 %v1586, %v1601
  %v1607 = vadd.f32 %v1587, %v1603
  %v1608 = vtanh.pop %v1606
  %v1609 = vtanh.pop %v1607
  %1612 = vrot.lane.b32.xlu0 %v1608, 64
  %v1613 = vpop.permute.xlu0 %1612
  %1614 = vrot.lane.b32.xlu0 %v1609, 64
  %v1615 = vpop.permute.xlu0 %1614
  %v1618 = vmul.f32 %v1575, %v1613
  %v1619 = vmul.f32 %v1577, %v1615
  %v1622 = vrot.slane %v1618, 1
  %v1623 = vsel %vm263, %v1619, %v1622
  %1624 = vrot.lane.b32.xlu0 %v1623, 32
  %v1625 = vpop.permute.xlu0 %1624
  %v1626 = vsel %vm132, %v1625, 0
  %1628 = vmatprep.subr.mxu0 0.0
  %1629 = vmatpush1.msra.mxu0 %v1262
  %1630 = vmatprep.subr.mxu0 0.0
  %1631 = vmatpush1.msra.mxu0 %v1263
  %1632 = vmatprep.subr.mxu0 0.0
  %1633 = vmatpush1.msra.mxu0 %v1264
  %1634 = vmatprep.subr.mxu0 0.0
  %1635 = vmatpush1.msra.mxu0 %v1265
  %1636 = vmatprep.subr.mxu0 0.0
  %1637 = vmatpush1.msra.mxu0 0.0
  %1638 = vmatprep.subr.mxu0 0.0
  %1639 = vmatpush1.msra.mxu0 0.0
  %1640 = vmatprep.subr.mxu0 0.0
  %1641 = vmatpush1.msra.mxu0 0.0
  %1642 = vmatprep.subr.mxu0 0.0
  %1643 = vmatpush1.msra.mxu0 0.0
  %1644 = vmatprep.subr.mxu0 0.0
  %1645 = vmatpush1.msra.mxu0 0.0
  %1646 = vmatprep.subr.mxu0 0.0
  %1647 = vmatpush1.msra.mxu0 0.0
  %1648 = vmatprep.subr.mxu0 0.0
  %1649 = vmatpush1.msra.mxu0 0.0
  %1650 = vmatprep.subr.mxu0 0.0
  %1651 = vmatpush1.msra.mxu0 0.0
  %1652 = vmatprep.subr.mxu0 0.0
  %1653 = vmatpush1.msra.mxu0 0.0
  %1654 = vmatprep.subr.mxu0 0.0
  %1655 = vmatpush1.msra.mxu0 0.0
  %1656 = vmatprep.subr.mxu0 0.0
  %1657 = vmatpush1.msra.mxu0 0.0
  %1658 = vmatprep.subr.mxu0 0.0
  %1659 = vmatpush1.msra.mxu0 0.0
  %1660 = vmatprep.subr.mxu0 0.0
  %1661 = vmatpush1.msra.mxu0 0.0
  %1662 = vmatprep.subr.mxu0 0.0
  %1663 = vmatpush1.msra.mxu0 0.0
  %1664 = vmatprep.subr.mxu0 0.0
  %1665 = vmatpush1.msra.mxu0 0.0
  %1666 = vmatprep.subr.mxu0 0.0
  %1667 = vmatpush1.msra.mxu0 0.0
  %1668 = vmatprep.subr.mxu0 0.0
  %1669 = vmatpush1.msra.mxu0 0.0
  %1670 = vmatprep.subr.mxu0 0.0
  %1671 = vmatpush1.msra.mxu0 0.0
  %1672 = vmatprep.subr.mxu0 0.0
  %1673 = vmatpush1.msra.mxu0 0.0
  %1674 = vmatprep.subr.mxu0 0.0
  %1675 = vmatpush1.msra.mxu0 0.0
  %1676 = vmatprep.subr.mxu0 0.0
  %1677 = vmatpush1.msra.mxu0 0.0
  %1678 = vmatprep.subr.mxu0 0.0
  %1679 = vmatpush1.msra.mxu0 0.0
  %1680 = vmatprep.subr.mxu0 0.0
  %1681 = vmatpush1.msra.mxu0 0.0
  %1682 = vmatprep.subr.mxu0 0.0
  %1683 = vmatpush1.msra.mxu0 0.0
  %1684 = vmatprep.subr.mxu0 0.0
  %1685 = vmatpush1.msra.mxu0 0.0
  %1686 = vmatprep.subr.mxu0 0.0
  %1687 = vmatpush1.msra.mxu0 0.0
  %1688 = vmatprep.subr.mxu0 0.0
  %1689 = vmatpush1.msra.mxu0 0.0
  %1690 = vmatprep.subr.mxu0 0.0
  %1691 = vmatpush1.msra.mxu0 0.0
  %1692 = vmatprep.mubr.f32.mxu0 0.0
  %1693 = vmatmul.mubr.f32.gmra.mrb[0].mxu0 %v1626
  %v1694 = vpop.f32.mrb[0].mxu0
  %v1695 = vadd.f32 0.0, %v1694
  %v1696 = vpop.f32.mrb[0].mxu0
  %1697 = vdwg.mxu0
  %v1699 = vrot.slane %v1695, 6
  %v1700 = vrot.slane %v1695, 7
  %v1703 = vadd.f32 %v1350, %v1699
  %v1704 = vadd.f32 %v1355, %v1700
  %v1705 = vxor.u32 %v1703, 2147483648
  %v1706 = vxor.u32 %v1704, 2147483648
  %v1707 = vmul.f32 %v1705, 1.442695
  %v1708 = vpow.pop %v1707
  %v1709 = vmul.f32 %v1706, 1.442695
  %v1710 = vpow.pop %v1709
  %v1711 = vadd.f32 %v1708, 1.0
  %v1712 = vadd.f32 %v1710, 1.0
  %v1713 = vrcp.pop %v1711
  %v1714 = vmul.f32 1.0, %v1713
  %v1715 = vrcp.pop %v1712
  %v1716 = vmul.f32 1.0, %v1715
  %v1717 = vtanh.pop %v1703
  %v1718 = vtanh.pop %v1704
  %v1721 = vrot.slane %v1606, 7
  %v1722 = vrot.slane %v1607, 7
  %v1725 = vmul.f32 %v1714, %v1721
  %v1726 = vmul.f32 %v1716, %v1722
  %1729 = vrot.lane.b32.xlu0 %v1717, 64
  %v1730 = vpop.permute.xlu0 %1729
  %1731 = vrot.lane.b32.xlu0 %v1718, 64
  %v1732 = vpop.permute.xlu0 %1731
  %v1735 = vmul.f32 %v1714, %v1730
  %v1736 = vmul.f32 %v1716, %v1732
  %1739 = vrot.lane.b32.xlu0 %v1735, 32
  %v1740 = vpop.permute.xlu0 %1739
  %1741 = vrot.lane.b32.xlu0 %v1736, 32
  %v1742 = vpop.permute.xlu0 %1741
  %v1745 = vadd.f32 %v1725, %v1740
  %v1746 = vadd.f32 %v1726, %v1742
  %v1747 = vtanh.pop %v1745
  %v1748 = vtanh.pop %v1746
  %1751 = vrot.lane.b32.xlu0 %v1747, 64
  %v1752 = vpop.permute.xlu0 %1751
  %1753 = vrot.lane.b32.xlu0 %v1748, 64
  %v1754 = vpop.permute.xlu0 %1753
  %v1757 = vmul.f32 %v1714, %v1752
  %v1758 = vmul.f32 %v1716, %v1754
  %v1761 = vrot.slane %v1757, 2
  %v1762 = vrot.slane %v1758, 1
  %v1763 = vsel %vm263, %v1762, %v1761
  %1764 = vrot.lane.b32.xlu0 %v1763, 32
  %v1765 = vpop.permute.xlu0 %1764
  %v1766 = vsel %vm132, %v1765, 0
  %1768 = vmatprep.subr.mxu0 0.0
  %1769 = vmatpush1.msra.mxu0 %v1262
  %1770 = vmatprep.subr.mxu0 0.0
  %1771 = vmatpush1.msra.mxu0 %v1263
  %1772 = vmatprep.subr.mxu0 0.0
  %1773 = vmatpush1.msra.mxu0 %v1264
  %1774 = vmatprep.subr.mxu0 0.0
  %1775 = vmatpush1.msra.mxu0 %v1265
  %1776 = vmatprep.subr.mxu0 0.0
  %1777 = vmatpush1.msra.mxu0 0.0
  %1778 = vmatprep.subr.mxu0 0.0
  %1779 = vmatpush1.msra.mxu0 0.0
  %1780 = vmatprep.subr.mxu0 0.0
  %1781 = vmatpush1.msra.mxu0 0.0
  %1782 = vmatprep.subr.mxu0 0.0
  %1783 = vmatpush1.msra.mxu0 0.0
  %1784 = vmatprep.subr.mxu0 0.0
  %1785 = vmatpush1.msra.mxu0 0.0
  %1786 = vmatprep.subr.mxu0 0.0
  %1787 = vmatpush1.msra.mxu0 0.0
  %1788 = vmatprep.subr.mxu0 0.0
  %1789 = vmatpush1.msra.mxu0 0.0
  %1790 = vmatprep.subr.mxu0 0.0
  %1791 = vmatpush1.msra.mxu0 0.0
  %1792 = vmatprep.subr.mxu0 0.0
  %1793 = vmatpush1.msra.mxu0 0.0
  %1794 = vmatprep.subr.mxu0 0.0
  %1795 = vmatpush1.msra.mxu0 0.0
  %1796 = vmatprep.subr.mxu0 0.0
  %1797 = vmatpush1.msra.mxu0 0.0
  %1798 = vmatprep.subr.mxu0 0.0
  %1799 = vmatpush1.msra.mxu0 0.0
  %1800 = vmatprep.subr.mxu0 0.0
  %1801 = vmatpush1.msra.mxu0 0.0
  %1802 = vmatprep.subr.mxu0 0.0
  %1803 = vmatpush1.msra.mxu0 0.0
  %1804 = vmatprep.subr.mxu0 0.0
  %1805 = vmatpush1.msra.mxu0 0.0
  %1806 = vmatprep.subr.mxu0 0.0
  %1807 = vmatpush1.msra.mxu0 0.0
  %1808 = vmatprep.subr.mxu0 0.0
  %1809 = vmatpush1.msra.mxu0 0.0
  %1810 = vmatprep.subr.mxu0 0.0
  %1811 = vmatpush1.msra.mxu0 0.0
  %1812 = vmatprep.subr.mxu0 0.0
  %1813 = vmatpush1.msra.mxu0 0.0
  %1814 = vmatprep.subr.mxu0 0.0
  %1815 = vmatpush1.msra.mxu0 0.0
  %1816 = vmatprep.subr.mxu0 0.0
  %1817 = vmatpush1.msra.mxu0 0.0
  %1818 = vmatprep.subr.mxu0 0.0
  %1819 = vmatpush1.msra.mxu0 0.0
  %1820 = vmatprep.subr.mxu0 0.0
  %1821 = vmatpush1.msra.mxu0 0.0
  %1822 = vmatprep.subr.mxu0 0.0
  %1823 = vmatpush1.msra.mxu0 0.0
  %1824 = vmatprep.subr.mxu0 0.0
  %1825 = vmatpush1.msra.mxu0 0.0
  %1826 = vmatprep.subr.mxu0 0.0
  %1827 = vmatpush1.msra.mxu0 0.0
  %1828 = vmatprep.subr.mxu0 0.0
  %1829 = vmatpush1.msra.mxu0 0.0
  %1830 = vmatprep.subr.mxu0 0.0
  %1831 = vmatpush1.msra.mxu0 0.0
  %1832 = vmatprep.mubr.f32.mxu0 0.0
  %1833 = vmatmul.mubr.f32.gmra.mrb[0].mxu0 %v1766
  %v1834 = vpop.f32.mrb[0].mxu0
  %v1835 = vadd.f32 0.0, %v1834
  %v1836 = vpop.f32.mrb[0].mxu0
  %1837 = vdwg.mxu0
  %v1839 = vrot.slane %v1835, 5
  %v1840 = vrot.slane %v1835, 6
  %v1843 = vadd.f32 %v1350, %v1839
  %v1844 = vadd.f32 %v1355, %v1840
  %v1845 = vxor.u32 %v1843, 2147483648
  %v1846 = vxor.u32 %v1844, 2147483648
  %v1847 = vmul.f32 %v1845, 1.442695
  %v1848 = vpow.pop %v1847
  %v1849 = vmul.f32 %v1846, 1.442695
  %v1850 = vpow.pop %v1849
  %v1851 = vadd.f32 %v1848, 1.0
  %v1852 = vadd.f32 %v1850, 1.0
  %v1853 = vrcp.pop %v1851
  %v1854 = vmul.f32 1.0, %v1853
  %v1855 = vrcp.pop %v1852
  %v1856 = vmul.f32 1.0, %v1855
  %v1857 = vtanh.pop %v1843
  %v1858 = vtanh.pop %v1844
  %v1861 = vrot.slane %v1745, 7
  %v1862 = vrot.slane %v1746, 7
  %v1865 = vmul.f32 %v1854, %v1861
  %v1866 = vmul.f32 %v1856, %v1862
  %1869 = vrot.lane.b32.xlu0 %v1857, 64
  %v1870 = vpop.permute.xlu0 %1869
  %1871 = vrot.lane.b32.xlu0 %v1858, 64
  %v1872 = vpop.permute.xlu0 %1871
  %v1875 = vmul.f32 %v1854, %v1870
  %v1876 = vmul.f32 %v1856, %v1872
  %1879 = vrot.lane.b32.xlu0 %v1875, 32
  %v1880 = vpop.permute.xlu0 %1879
  %1881 = vrot.lane.b32.xlu0 %v1876, 32
  %v1882 = vpop.permute.xlu0 %1881
  %v1885 = vadd.f32 %v1865, %v1880
  %v1886 = vadd.f32 %v1866, %v1882
  %v1887 = vtanh.pop %v1885
  %v1888 = vtanh.pop %v1886
  %1891 = vrot.lane.b32.xlu0 %v1887, 64
  %v1892 = vpop.permute.xlu0 %1891
  %1893 = vrot.lane.b32.xlu0 %v1888, 64
  %v1894 = vpop.permute.xlu0 %1893
  %v1897 = vmul.f32 %v1854, %v1892
  %v1898 = vmul.f32 %v1856, %v1894
  %v1901 = vrot.slane %v1897, 3
  %v1902 = vrot.slane %v1898, 2
  %v1903 = vsel %vm263, %v1902, %v1901
  %1904 = vrot.lane.b32.xlu0 %v1903, 32
  %v1905 = vpop.permute.xlu0 %1904
  %v1906 = vsel %vm132, %v1905, 0
  %1908 = vmatprep.subr.mxu0 0.0
  %1909 = vmatpush1.msra.mxu0 %v1262
  %1910 = vmatprep.subr.mxu0 0.0
  %1911 = vmatpush1.msra.mxu0 %v1263
  %1912 = vmatprep.subr.mxu0 0.0
  %1913 = vmatpush1.msra.mxu0 %v1264
  %1914 = vmatprep.subr.mxu0 0.0
  %1915 = vmatpush1.msra.mxu0 %v1265
  %1916 = vmatprep.subr.mxu0 0.0
  %1917 = vmatpush1.msra.mxu0 0.0
  %1918 = vmatprep.subr.mxu0 0.0
  %1919 = vmatpush1.msra.mxu0 0.0
  %1920 = vmatprep.subr.mxu0 0.0
  %1921 = vmatpush1.msra.mxu0 0.0
  %1922 = vmatprep.subr.mxu0 0.0
  %1923 = vmatpush1.msra.mxu0 0.0
  %1924 = vmatprep.subr.mxu0 0.0
  %1925 = vmatpush1.msra.mxu0 0.0
  %1926 = vmatprep.subr.mxu0 0.0
  %1927 = vmatpush1.msra.mxu0 0.0
  %1928 = vmatprep.subr.mxu0 0.0
  %1929 = vmatpush1.msra.mxu0 0.0
  %1930 = vmatprep.subr.mxu0 0.0
  %1931 = vmatpush1.msra.mxu0 0.0
  %1932 = vmatprep.subr.mxu0 0.0
  %1933 = vmatpush1.msra.mxu0 0.0
  %1934 = vmatprep.subr.mxu0 0.0
  %1935 = vmatpush1.msra.mxu0 0.0
  %1936 = vmatprep.subr.mxu0 0.0
  %1937 = vmatpush1.msra.mxu0 0.0
  %1938 = vmatprep.subr.mxu0 0.0
  %1939 = vmatpush1.msra.mxu0 0.0
  %1940 = vmatprep.subr.mxu0 0.0
  %1941 = vmatpush1.msra.mxu0 0.0
  %1942 = vmatprep.subr.mxu0 0.0
  %1943 = vmatpush1.msra.mxu0 0.0
  %1944 = vmatprep.subr.mxu0 0.0
  %1945 = vmatpush1.msra.mxu0 0.0
  %1946 = vmatprep.subr.mxu0 0.0
  %1947 = vmatpush1.msra.mxu0 0.0
  %1948 = vmatprep.subr.mxu0 0.0
  %1949 = vmatpush1.msra.mxu0 0.0
  %1950 = vmatprep.subr.mxu0 0.0
  %1951 = vmatpush1.msra.mxu0 0.0
  %1952 = vmatprep.subr.mxu0 0.0
  %1953 = vmatpush1.msra.mxu0 0.0
  %1954 = vmatprep.subr.mxu0 0.0
  %1955 = vmatpush1.msra.mxu0 0.0
  %1956 = vmatprep.subr.mxu0 0.0
  %1957 = vmatpush1.msra.mxu0 0.0
  %1958 = vmatprep.subr.mxu0 0.0
  %1959 = vmatpush1.msra.mxu0 0.0
  %1960 = vmatprep.subr.mxu0 0.0
  %1961 = vmatpush1.msra.mxu0 0.0
  %1962 = vmatprep.subr.mxu0 0.0
  %1963 = vmatpush1.msra.mxu0 0.0
  %1964 = vmatprep.subr.mxu0 0.0
  %1965 = vmatpush1.msra.mxu0 0.0
  %1966 = vmatprep.subr.mxu0 0.0
  %1967 = vmatpush1.msra.mxu0 0.0
  %1968 = vmatprep.subr.mxu0 0.0
  %1969 = vmatpush1.msra.mxu0 0.0
  %1970 = vmatprep.subr.mxu0 0.0
  %1971 = vmatpush1.msra.mxu0 0.0
  %1972 = vmatprep.mubr.f32.mxu0 0.0
  %1973 = vmatmul.mubr.f32.gmra.mrb[0].mxu0 %v1906
  %v1974 = vpop.f32.mrb[0].mxu0
  %v1975 = vadd.f32 0.0, %v1974
  %v1976 = vpop.f32.mrb[0].mxu0
  %1977 = vdwg.mxu0
  %v1979 = vrot.slane %v1975, 4
  %v1980 = vrot.slane %v1975, 5
  %v1983 = vadd.f32 %v1350, %v1979
  %v1984 = vadd.f32 %v1355, %v1980
  %v1985 = vxor.u32 %v1983, 2147483648
  %v1986 = vxor.u32 %v1984, 2147483648
  %v1987 = vmul.f32 %v1985, 1.442695
  %v1988 = vpow.pop %v1987
  %v1989 = vmul.f32 %v1986, 1.442695
  %v1990 = vpow.pop %v1989
  %v1991 = vadd.f32 %v1988, 1.0
  %v1992 = vadd.f32 %v1990, 1.0
  %v1993 = vrcp.pop %v1991
  %v1994 = vmul.f32 1.0, %v1993
  %v1995 = vrcp.pop %v1992
  %v1996 = vmul.f32 1.0, %v1995
  %v1997 = vtanh.pop %v1983
  %v1998 = vtanh.pop %v1984
  %v2001 = vrot.slane %v1885, 7
  %v2002 = vrot.slane %v1886, 7
  %v2005 = vmul.f32 %v1994, %v2001
  %v2006 = vmul.f32 %v1996, %v2002
  %2009 = vrot.lane.b32.xlu0 %v1997, 64
  %v2010 = vpop.permute.xlu0 %2009
  %2011 = vrot.lane.b32.xlu0 %v1998, 64
  %v2012 = vpop.permute.xlu0 %2011
  %v2015 = vmul.f32 %v1994, %v2010
  %v2016 = vmul.f32 %v1996, %v2012
  %2019 = vrot.lane.b32.xlu0 %v2015, 32
  %v2020 = vpop.permute.xlu0 %2019
  %2021 = vrot.lane.b32.xlu0 %v2016, 32
  %v2022 = vpop.permute.xlu0 %2021
  %v2025 = vadd.f32 %v2005, %v2020
  %v2026 = vadd.f32 %v2006, %v2022
  %v2027 = vtanh.pop %v2025
  %v2028 = vtanh.pop %v2026
  %2031 = vrot.lane.b32.xlu0 %v2027, 64
  %v2032 = vpop.permute.xlu0 %2031
  %2033 = vrot.lane.b32.xlu0 %v2028, 64
  %v2034 = vpop.permute.xlu0 %2033
  %v2037 = vmul.f32 %v1994, %v2032
  %v2038 = vmul.f32 %v1996, %v2034
  %v2041 = vrot.slane %v2037, 4
  %v2042 = vrot.slane %v2038, 3
  %v2043 = vsel %vm263, %v2042, %v2041
  %2044 = vrot.lane.b32.xlu0 %v2043, 32
  %v2045 = vpop.permute.xlu0 %2044
  %v2046 = vsel %vm132, %v2045, 0
  %2048 = vmatprep.subr.mxu0 0.0
  %2049 = vmatpush1.msra.mxu0 %v1262
  %2050 = vmatprep.subr.mxu0 0.0
  %2051 = vmatpush1.msra.mxu0 %v1263
  %2052 = vmatprep.subr.mxu0 0.0
  %2053 = vmatpush1.msra.mxu0 %v1264
  %2054 = vmatprep.subr.mxu0 0.0
  %2055 = vmatpush1.msra.mxu0 %v1265
  %2056 = vmatprep.subr.mxu0 0.0
  %2057 = vmatpush1.msra.mxu0 0.0
  %2058 = vmatprep.subr.mxu0 0.0
  %2059 = vmatpush1.msra.mxu0 0.0
  %2060 = vmatprep.subr.mxu0 0.0
  %2061 = vmatpush1.msra.mxu0 0.0
  %2062 = vmatprep.subr.mxu0 0.0
  %2063 = vmatpush1.msra.mxu0 0.0
  %2064 = vmatprep.subr.mxu0 0.0
  %2065 = vmatpush1.msra.mxu0 0.0
  %2066 = vmatprep.subr.mxu0 0.0
  %2067 = vmatpush1.msra.mxu0 0.0
  %2068 = vmatprep.subr.mxu0 0.0
  %2069 = vmatpush1.msra.mxu0 0.0
  %2070 = vmatprep.subr.mxu0 0.0
  %2071 = vmatpush1.msra.mxu0 0.0
  %2072 = vmatprep.subr.mxu0 0.0
  %2073 = vmatpush1.msra.mxu0 0.0
  %2074 = vmatprep.subr.mxu0 0.0
  %2075 = vmatpush1.msra.mxu0 0.0
  %2076 = vmatprep.subr.mxu0 0.0
  %2077 = vmatpush1.msra.mxu0 0.0
  %2078 = vmatprep.subr.mxu0 0.0
  %2079 = vmatpush1.msra.mxu0 0.0
  %2080 = vmatprep.subr.mxu0 0.0
  %2081 = vmatpush1.msra.mxu0 0.0
  %2082 = vmatprep.subr.mxu0 0.0
  %2083 = vmatpush1.msra.mxu0 0.0
  %2084 = vmatprep.subr.mxu0 0.0
  %2085 = vmatpush1.msra.mxu0 0.0
  %2086 = vmatprep.subr.mxu0 0.0
  %2087 = vmatpush1.msra.mxu0 0.0
  %2088 = vmatprep.subr.mxu0 0.0
  %2089 = vmatpush1.msra.mxu0 0.0
  %2090 = vmatprep.subr.mxu0 0.0
  %2091 = vmatpush1.msra.mxu0 0.0
  %2092 = vmatprep.subr.mxu0 0.0
  %2093 = vmatpush1.msra.mxu0 0.0
  %2094 = vmatprep.subr.mxu0 0.0
  %2095 = vmatpush1.msra.mxu0 0.0
  %2096 = vmatprep.subr.mxu0 0.0
  %2097 = vmatpush1.msra.mxu0 0.0
  %2098 = vmatprep.subr.mxu0 0.0
  %2099 = vmatpush1.msra.mxu0 0.0
  %2100 = vmatprep.subr.mxu0 0.0
  %2101 = vmatpush1.msra.mxu0 0.0
  %2102 = vmatprep.subr.mxu0 0.0
  %2103 = vmatpush1.msra.mxu0 0.0
  %2104 = vmatprep.subr.mxu0 0.0
  %2105 = vmatpush1.msra.mxu0 0.0
  %2106 = vmatprep.subr.mxu0 0.0
  %2107 = vmatpush1.msra.mxu0 0.0
  %2108 = vmatprep.subr.mxu0 0.0
  %2109 = vmatpush1.msra.mxu0 0.0
  %2110 = vmatprep.subr.mxu0 0.0
  %2111 = vmatpush1.msra.mxu0 0.0
  %2112 = vmatprep.mubr.f32.mxu0 0.0
  %2113 = vmatmul.mubr.f32.gmra.mrb[0].mxu0 %v2046
  %v2114 = vpop.f32.mrb[0].mxu0
  %v2115 = vadd.f32 0.0, %v2114
  %v2116 = vpop.f32.mrb[0].mxu0
  %2117 = vdwg.mxu0
  %v2119 = vrot.slane %v2115, 3
  %v2120 = vrot.slane %v2115, 4
  %v2123 = vadd.f32 %v1350, %v2119
  %v2124 = vadd.f32 %v1355, %v2120
  %v2125 = vxor.u32 %v2123, 2147483648
  %v2126 = vxor.u32 %v2124, 2147483648
  %v2127 = vmul.f32 %v2125, 1.442695
  %v2128 = vpow.pop %v2127
  %v2129 = vmul.f32 %v2126, 1.442695
  %v2130 = vpow.pop %v2129
  %v2131 = vadd.f32 %v2128, 1.0
  %v2132 = vadd.f32 %v2130, 1.0
  %v2133 = vrcp.pop %v2131
  %v2134 = vmul.f32 1.0, %v2133
  %v2135 = vrcp.pop %v2132
  %v2136 = vmul.f32 1.0, %v2135
  %v2137 = vtanh.pop %v2123
  %v2138 = vtanh.pop %v2124
  %v2141 = vrot.slane %v2025, 7
  %v2142 = vrot.slane %v2026, 7
  %v2145 = vmul.f32 %v2134, %v2141
  %v2146 = vmul.f32 %v2136, %v2142
  %2149 = vrot.lane.b32.xlu0 %v2137, 64
  %v2150 = vpop.permute.xlu0 %2149
  %2151 = vrot.lane.b32.xlu0 %v2138, 64
  %v2152 = vpop.permute.xlu0 %2151
  %v2155 = vmul.f32 %v2134, %v2150
  %v2156 = vmul.f32 %v2136, %v2152
  %2159 = vrot.lane.b32.xlu0 %v2155, 32
  %v2160 = vpop.permute.xlu0 %2159
  %2161 = vrot.lane.b32.xlu0 %v2156, 32
  %v2162 = vpop.permute.xlu0 %2161
  %v2165 = vadd.f32 %v2145, %v2160
  %v2166 = vadd.f32 %v2146, %v2162
  %v2167 = vtanh.pop %v2165
  %v2168 = vtanh.pop %v2166
  %2171 = vrot.lane.b32.xlu0 %v2167, 64
  %v2172 = vpop.permute.xlu0 %2171
  %2173 = vrot.lane.b32.xlu0 %v2168, 64
  %v2174 = vpop.permute.xlu0 %2173
  %v2177 = vmul.f32 %v2134, %v2172
  %v2178 = vmul.f32 %v2136, %v2174
  %v2181 = vrot.slane %v2177, 5
  %v2182 = vrot.slane %v2178, 4
  %v2183 = vsel %vm263, %v2182, %v2181
  %2184 = vrot.lane.b32.xlu0 %v2183, 32
  %v2185 = vpop.permute.xlu0 %2184
  %v2186 = vsel %vm132, %v2185, 0
  %2188 = vmatprep.subr.mxu0 0.0
  %2189 = vmatpush1.msra.mxu0 %v1262
  %2190 = vmatprep.subr.mxu0 0.0
  %2191 = vmatpush1.msra.mxu0 %v1263
  %2192 = vmatprep.subr.mxu0 0.0
  %2193 = vmatpush1.msra.mxu0 %v1264
  %2194 = vmatprep.subr.mxu0 0.0
  %2195 = vmatpush1.msra.mxu0 %v1265
  %2196 = vmatprep.subr.mxu0 0.0
  %2197 = vmatpush1.msra.mxu0 0.0
  %2198 = vmatprep.subr.mxu0 0.0
  %2199 = vmatpush1.msra.mxu0 0.0
  %2200 = vmatprep.subr.mxu0 0.0
  %2201 = vmatpush1.msra.mxu0 0.0
  %2202 = vmatprep.subr.mxu0 0.0
  %2203 = vmatpush1.msra.mxu0 0.0
  %2204 = vmatprep.subr.mxu0 0.0
  %2205 = vmatpush1.msra.mxu0 0.0
  %2206 = vmatprep.subr.mxu0 0.0
  %2207 = vmatpush1.msra.mxu0 0.0
  %2208 = vmatprep.subr.mxu0 0.0
  %2209 = vmatpush1.msra.mxu0 0.0
  %2210 = vmatprep.subr.mxu0 0.0
  %2211 = vmatpush1.msra.mxu0 0.0
  %2212 = vmatprep.subr.mxu0 0.0
  %2213 = vmatpush1.msra.mxu0 0.0
  %2214 = vmatprep.subr.mxu0 0.0
  %2215 = vmatpush1.msra.mxu0 0.0
  %2216 = vmatprep.subr.mxu0 0.0
  %2217 = vmatpush1.msra.mxu0 0.0
  %2218 = vmatprep.subr.mxu0 0.0
  %2219 = vmatpush1.msra.mxu0 0.0
  %2220 = vmatprep.subr.mxu0 0.0
  %2221 = vmatpush1.msra.mxu0 0.0
  %2222 = vmatprep.subr.mxu0 0.0
  %2223 = vmatpush1.msra.mxu0 0.0
  %2224 = vmatprep.subr.mxu0 0.0
  %2225 = vmatpush1.msra.mxu0 0.0
  %2226 = vmatprep.subr.mxu0 0.0
  %2227 = vmatpush1.msra.mxu0 0.0
  %2228 = vmatprep.subr.mxu0 0.0
  %2229 = vmatpush1.msra.mxu0 0.0
  %2230 = vmatprep.subr.mxu0 0.0
  %2231 = vmatpush1.msra.mxu0 0.0
  %2232 = vmatprep.subr.mxu0 0.0
  %2233 = vmatpush1.msra.mxu0 0.0
  %2234 = vmatprep.subr.mxu0 0.0
  %2235 = vmatpush1.msra.mxu0 0.0
  %2236 = vmatprep.subr.mxu0 0.0
  %2237 = vmatpush1.msra.mxu0 0.0
  %2238 = vmatprep.subr.mxu0 0.0
  %2239 = vmatpush1.msra.mxu0 0.0
  %2240 = vmatprep.subr.mxu0 0.0
  %2241 = vmatpush1.msra.mxu0 0.0
  %2242 = vmatprep.subr.mxu0 0.0
  %2243 = vmatpush1.msra.mxu0 0.0
  %2244 = vmatprep.subr.mxu0 0.0
  %2245 = vmatpush1.msra.mxu0 0.0
  %2246 = vmatprep.subr.mxu0 0.0
  %2247 = vmatpush1.msra.mxu0 0.0
  %2248 = vmatprep.subr.mxu0 0.0
  %2249 = vmatpush1.msra.mxu0 0.0
  %2250 = vmatprep.subr.mxu0 0.0
  %2251 = vmatpush1.msra.mxu0 0.0
  %2252 = vmatprep.mubr.f32.mxu0 0.0
  %2253 = vmatmul.mubr.f32.gmra.mrb[0].mxu0 %v2186
  %v2254 = vpop.f32.mrb[0].mxu0
  %v2255 = vadd.f32 0.0, %v2254
  %v2256 = vpop.f32.mrb[0].mxu0
  %2257 = vdwg.mxu0
  %v2259 = vrot.slane %v2255, 2
  %v2260 = vrot.slane %v2255, 3
  %v2263 = vadd.f32 %v1350, %v2259
  %v2264 = vadd.f32 %v1355, %v2260
  %v2265 = vxor.u32 %v2263, 2147483648
  %v2266 = vxor.u32 %v2264, 2147483648
  %v2267 = vmul.f32 %v2265, 1.442695
  %v2268 = vpow.pop %v2267
  %v2269 = vmul.f32 %v2266, 1.442695
  %v2270 = vpow.pop %v2269
  %v2271 = vadd.f32 %v2268, 1.0
  %v2272 = vadd.f32 %v2270, 1.0
  %v2273 = vrcp.pop %v2271
  %v2274 = vmul.f32 1.0, %v2273
  %v2275 = vrcp.pop %v2272
  %v2276 = vmul.f32 1.0, %v2275
  %v2277 = vtanh.pop %v2263
  %v2278 = vtanh.pop %v2264
  %v2281 = vrot.slane %v2165, 7
  %v2282 = vrot.slane %v2166, 7
  %v2285 = vmul.f32 %v2274, %v2281
  %v2286 = vmul.f32 %v2276, %v2282
  %2289 = vrot.lane.b32.xlu0 %v2277, 64
  %v2290 = vpop.permute.xlu0 %2289
  %2291 = vrot.lane.b32.xlu0 %v2278, 64
  %v2292 = vpop.permute.xlu0 %2291
  %v2295 = vmul.f32 %v2274, %v2290
  %v2296 = vmul.f32 %v2276, %v2292
  %2299 = vrot.lane.b32.xlu0 %v2295, 32
  %v2300 = vpop.permute.xlu0 %2299
  %2301 = vrot.lane.b32.xlu0 %v2296, 32
  %v2302 = vpop.permute.xlu0 %2301
  %v2305 = vadd.f32 %v2285, %v2300
  %v2306 = vadd.f32 %v2286, %v2302
  %v2307 = vtanh.pop %v2305
  %v2308 = vtanh.pop %v2306
  %2311 = vrot.lane.b32.xlu0 %v2307, 64
  %v2312 = vpop.permute.xlu0 %2311
  %2313 = vrot.lane.b32.xlu0 %v2308, 64
  %v2314 = vpop.permute.xlu0 %2313
  %v2317 = vmul.f32 %v2274, %v2312
  %v2318 = vmul.f32 %v2276, %v2314
  %v2321 = vrot.slane %v2317, 6
  %v2322 = vrot.slane %v2318, 5
  %v2323 = vsel %vm263, %v2322, %v2321
  %2324 = vrot.lane.b32.xlu0 %v2323, 32
  %v2325 = vpop.permute.xlu0 %2324
  %v2326 = vsel %vm132, %v2325, 0
  %2328 = vmatprep.subr.mxu0 0.0
  %2329 = vmatpush1.msra.mxu0 %v1262
  %2330 = vmatprep.subr.mxu0 0.0
  %2331 = vmatpush1.msra.mxu0 %v1263
  %2332 = vmatprep.subr.mxu0 0.0
  %2333 = vmatpush1.msra.mxu0 %v1264
  %2334 = vmatprep.subr.mxu0 0.0
  %2335 = vmatpush1.msra.mxu0 %v1265
  %2336 = vmatprep.subr.mxu0 0.0
  %2337 = vmatpush1.msra.mxu0 0.0
  %2338 = vmatprep.subr.mxu0 0.0
  %2339 = vmatpush1.msra.mxu0 0.0
  %2340 = vmatprep.subr.mxu0 0.0
  %2341 = vmatpush1.msra.mxu0 0.0
  %2342 = vmatprep.subr.mxu0 0.0
  %2343 = vmatpush1.msra.mxu0 0.0
  %2344 = vmatprep.subr.mxu0 0.0
  %2345 = vmatpush1.msra.mxu0 0.0
  %2346 = vmatprep.subr.mxu0 0.0
  %2347 = vmatpush1.msra.mxu0 0.0
  %2348 = vmatprep.subr.mxu0 0.0
  %2349 = vmatpush1.msra.mxu0 0.0
  %2350 = vmatprep.subr.mxu0 0.0
  %2351 = vmatpush1.msra.mxu0 0.0
  %2352 = vmatprep.subr.mxu0 0.0
  %2353 = vmatpush1.msra.mxu0 0.0
  %2354 = vmatprep.subr.mxu0 0.0
  %2355 = vmatpush1.msra.mxu0 0.0
  %2356 = vmatprep.subr.mxu0 0.0
  %2357 = vmatpush1.msra.mxu0 0.0
  %2358 = vmatprep.subr.mxu0 0.0
  %2359 = vmatpush1.msra.mxu0 0.0
  %2360 = vmatprep.subr.mxu0 0.0
  %2361 = vmatpush1.msra.mxu0 0.0
  %2362 = vmatprep.subr.mxu0 0.0
  %2363 = vmatpush1.msra.mxu0 0.0
  %2364 = vmatprep.subr.mxu0 0.0
  %2365 = vmatpush1.msra.mxu0 0.0
  %2366 = vmatprep.subr.mxu0 0.0
  %2367 = vmatpush1.msra.mxu0 0.0
  %2368 = vmatprep.subr.mxu0 0.0
  %2369 = vmatpush1.msra.mxu0 0.0
  %2370 = vmatprep.subr.mxu0 0.0
  %2371 = vmatpush1.msra.mxu0 0.0
  %2372 = vmatprep.subr.mxu0 0.0
  %2373 = vmatpush1.msra.mxu0 0.0
  %2374 = vmatprep.subr.mxu0 0.0
  %2375 = vmatpush1.msra.mxu0 0.0
  %2376 = vmatprep.subr.mxu0 0.0
  %2377 = vmatpush1.msra.mxu0 0.0
  %2378 = vmatprep.subr.mxu0 0.0
  %2379 = vmatpush1.msra.mxu0 0.0
  %2380 = vmatprep.subr.mxu0 0.0
  %2381 = vmatpush1.msra.mxu0 0.0
  %2382 = vmatprep.subr.mxu0 0.0
  %2383 = vmatpush1.msra.mxu0 0.0
  %2384 = vmatprep.subr.mxu0 0.0
  %2385 = vmatpush1.msra.mxu0 0.0
  %2386 = vmatprep.subr.mxu0 0.0
  %2387 = vmatpush1.msra.mxu0 0.0
  %2388 = vmatprep.subr.mxu0 0.0
  %2389 = vmatpush1.msra.mxu0 0.0
  %2390 = vmatprep.subr.mxu0 0.0
  %2391 = vmatpush1.msra.mxu0 0.0
  %2392 = vmatprep.mubr.f32.mxu0 0.0
  %2393 = vmatmul.mubr.f32.gmra.mrb[0].mxu0 %v2326
  %v2394 = vpop.f32.mrb[0].mxu0
  %v2395 = vadd.f32 0.0, %v2394
  %v2396 = vpop.f32.mrb[0].mxu0
  %2397 = vdwg.mxu0
  %v2399 = vrot.slane %v2395, 1
  %v2400 = vrot.slane %v2395, 2
  %v2403 = vadd.f32 %v1350, %v2399
  %v2404 = vadd.f32 %v1355, %v2400
  %v2405 = vxor.u32 %v2403, 2147483648
  %v2406 = vxor.u32 %v2404, 2147483648
  %v2407 = vmul.f32 %v2405, 1.442695
  %v2408 = vpow.pop %v2407
  %v2409 = vmul.f32 %v2406, 1.442695
  %v2410 = vpow.pop %v2409
  %v2411 = vadd.f32 %v2408, 1.0
  %v2412 = vadd.f32 %v2410, 1.0
  %v2413 = vrcp.pop %v2411
  %v2414 = vmul.f32 1.0, %v2413
  %v2415 = vrcp.pop %v2412
  %v2416 = vmul.f32 1.0, %v2415
  %v2417 = vtanh.pop %v2403
  %v2418 = vtanh.pop %v2404
  %v2421 = vrot.slane %v2305, 7
  %v2422 = vrot.slane %v2306, 7
  %v2425 = vmul.f32 %v2414, %v2421
  %v2426 = vmul.f32 %v2416, %v2422
  %2429 = vrot.lane.b32.xlu0 %v2417, 64
  %v2430 = vpop.permute.xlu0 %2429
  %2431 = vrot.lane.b32.xlu0 %v2418, 64
  %v2432 = vpop.permute.xlu0 %2431
  %v2435 = vmul.f32 %v2414, %v2430
  %v2436 = vmul.f32 %v2416, %v2432
  %2439 = vrot.lane.b32.xlu0 %v2435, 32
  %v2440 = vpop.permute.xlu0 %2439
  %2441 = vrot.lane.b32.xlu0 %v2436, 32
  %v2442 = vpop.permute.xlu0 %2441
  %v2445 = vadd.f32 %v2425, %v2440
  %v2446 = vadd.f32 %v2426, %v2442
  %v2447 = vtanh.pop %v2445
  %v2448 = vtanh.pop %v2446
  %2451 = vrot.lane.b32.xlu0 %v2447, 64
  %v2452 = vpop.permute.xlu0 %2451
  %2453 = vrot.lane.b32.xlu0 %v2448, 64
  %v2454 = vpop.permute.xlu0 %2453
  %v2457 = vmul.f32 %v2414, %v2452
  %v2458 = vmul.f32 %v2416, %v2454
  %2460 = vrot.lane.b32.xlu0 %v1623, 64
  %v2461 = vpop.permute.xlu0 %2460
  %2463 = vrot.lane.b32.xlu0 %v1763, 96
  %v2464 = vpop.permute.xlu0 %2463
  %2468 = vrot.lane.b32.xlu0 %v2183, 64
  %v2469 = vpop.permute.xlu0 %2468
  %2471 = vrot.lane.b32.xlu0 %v2323, 96
  %v2472 = vpop.permute.xlu0 %2471
  %v2476 = vrot.slane %v2457, 7
  %v2477 = vrot.slane %v2458, 6
  %v2478 = vsel %vm263, %v2477, %v2476
  %v2480 = vsel %vm132, %v1487, %v2461
  %vm2481 = vcmask 523264
  %v2482 = vsel %vm2481, %v2480, %v2464
  %vm2483 = vcmask 785408
  %v2484 = vsel %vm2483, %v2482, %v1903
  %v2485 = vsel %vm132, %v2045, %v2469
  %v2486 = vsel %vm2481, %v2485, %v2472
  %v2487 = vsel %vm2483, %v2486, %v2478
  %v2488 = vld [vmem:[%s7] sm:$0xff]
  %v2489 = vld [vmem:[%s7 + $0x8] sm:$0xff]
  %v2490 = vld [vmem:[%s7 + $0x10] sm:$0xff]
  %v2491 = vld [vmem:[%s7 + $0x18] sm:$0xff]
  %v2492 = vld [vmem:[%s7 + $0x20] sm:$0xff]
  %v2493 = vld [vmem:[%s7 + $0x28] sm:$0xff]
  %v2494 = vld [vmem:[%s7 + $0x30] sm:$0xff]
  %v2495 = vld [vmem:[%s7 + $0x38] sm:$0xff]
  %v2496 = vld [vmem:[%s7 + $0x40] sm:$0xff]
  %v2497 = vld [vmem:[%s7 + $0x48] sm:$0xff]
  %v2498 = vld [vmem:[%s7 + $0x50] sm:$0xff]
  %v2499 = vld [vmem:[%s7 + $0x58] sm:$0xff]
  %v2500 = vld [vmem:[%s7 + $0x60] sm:$0xff]
  %v2501 = vld [vmem:[%s7 + $0x68] sm:$0xff]
  %v2502 = vld [vmem:[%s7 + $0x70] sm:$0xff]
  %v2503 = vld [vmem:[%s7 + $0x78] sm:$0xff]
  %v2504 = vld [vmem:[%s7 + $0x80] sm:$0xff]
  %v2505 = vld [vmem:[%s7 + $0x88] sm:$0xff]
  %v2506 = vld [vmem:[%s7 + $0x90] sm:$0xff]
  %v2507 = vld [vmem:[%s7 + $0x98] sm:$0xff]
  %v2508 = vld [vmem:[%s7 + $0xa0] sm:$0xff]
  %v2509 = vld [vmem:[%s7 + $0xa8] sm:$0xff]
  %v2510 = vld [vmem:[%s7 + $0xb0] sm:$0xff]
  %v2511 = vld [vmem:[%s7 + $0xb8] sm:$0xff]
  %v2512 = vld [vmem:[%s7 + $0xc0] sm:$0xff]
  %v2513 = vld [vmem:[%s7 + $0xc8] sm:$0xff]
  %v2514 = vld [vmem:[%s7 + $0xd0] sm:$0xff]
  %v2515 = vld [vmem:[%s7 + $0xd8] sm:$0xff]
  %v2516 = vld [vmem:[%s7 + $0xe0] sm:$0xff]
  %v2517 = vld [vmem:[%s7 + $0xe8] sm:$0xff]
  %v2518 = vld [vmem:[%s7 + $0xf0] sm:$0xff]
  %v2519 = vld [vmem:[%s7 + $0xf8] sm:$0xff]
  %v2520 = vld [vmem:[%s8] sm:$0x1]
  %v2522 = vlaneseq
  %v2523 = vshrl.u32 %v2522, 7
  %v2524 = vsub.s32 0, %v2523
  %v2525 = vrot.slane %v2520, %v2524
  %2527 = vmatprep.subr.mxu0 0.0
  %2528 = vmatpush1.msra.mxu0 %v2488
  %2529 = vmatprep.subr.mxu0 0.0
  %2530 = vmatpush1.msra.mxu0 %v2489
  %2531 = vmatprep.subr.mxu0 0.0
  %2532 = vmatpush1.msra.mxu0 %v2490
  %2533 = vmatprep.subr.mxu0 0.0
  %2534 = vmatpush1.msra.mxu0 %v2491
  %2535 = vmatprep.subr.mxu0 0.0
  %2536 = vmatpush1.msra.mxu0 %v2492
  %2537 = vmatprep.subr.mxu0 0.0
  %2538 = vmatpush1.msra.mxu0 %v2493
  %2539 = vmatprep.subr.mxu0 0.0
  %2540 = vmatpush1.msra.mxu0 %v2494
  %2541 = vmatprep.subr.mxu0 0.0
  %2542 = vmatpush1.msra.mxu0 %v2495
  %2543 = vmatprep.subr.mxu0 0.0
  %2544 = vmatpush1.msra.mxu0 %v2496
  %2545 = vmatprep.subr.mxu0 0.0
  %2546 = vmatpush1.msra.mxu0 %v2497
  %2547 = vmatprep.subr.mxu0 0.0
  %2548 = vmatpush1.msra.mxu0 %v2498
  %2549 = vmatprep.subr.mxu0 0.0
  %2550 = vmatpush1.msra.mxu0 %v2499
  %2551 = vmatprep.subr.mxu0 0.0
  %2552 = vmatpush1.msra.mxu0 %v2500
  %2553 = vmatprep.subr.mxu0 0.0
  %2554 = vmatpush1.msra.mxu0 %v2501
  %2555 = vmatprep.subr.mxu0 0.0
  %2556 = vmatpush1.msra.mxu0 %v2502
  %2557 = vmatprep.subr.mxu0 0.0
  %2558 = vmatpush1.msra.mxu0 %v2503
  %2559 = vmatprep.subr.mxu0 0.0
  %2560 = vmatpush1.msra.mxu0 %v2504
  %2561 = vmatprep.subr.mxu0 0.0
  %2562 = vmatpush1.msra.mxu0 %v2505
  %2563 = vmatprep.subr.mxu0 0.0
  %2564 = vmatpush1.msra.mxu0 %v2506
  %2565 = vmatprep.subr.mxu0 0.0
  %2566 = vmatpush1.msra.mxu0 %v2507
  %2567 = vmatprep.subr.mxu0 0.0
  %2568 = vmatpush1.msra.mxu0 %v2508
  %2569 = vmatprep.subr.mxu0 0.0
  %2570 = vmatpush1.msra.mxu0 %v2509
  %2571 = vmatprep.subr.mxu0 0.0
  %2572 = vmatpush1.msra.mxu0 %v2510
  %2573 = vmatprep.subr.mxu0 0.0
  %2574 = vmatpush1.msra.mxu0 %v2511
  %2575 = vmatprep.subr.mxu0 0.0
  %2576 = vmatpush1.msra.mxu0 %v2512
  %2577 = vmatprep.subr.mxu0 0.0
  %2578 = vmatpush1.msra.mxu0 %v2513
  %2579 = vmatprep.subr.mxu0 0.0
  %2580 = vmatpush1.msra.mxu0 %v2514
  %2581 = vmatprep.subr.mxu0 0.0
  %2582 = vmatpush1.msra.mxu0 %v2515
  %2583 = vmatprep.subr.mxu0 0.0
  %2584 = vmatpush1.msra.mxu0 %v2516
  %2585 = vmatprep.subr.mxu0 0.0
  %2586 = vmatpush1.msra.mxu0 %v2517
  %2587 = vmatprep.subr.mxu0 0.0
  %2588 = vmatpush1.msra.mxu0 %v2518
  %2589 = vmatprep.subr.mxu0 0.0
  %2590 = vmatpush1.msra.mxu0 %v2519
  %2591 = vmatprep.mubr.f32.mxu0 %v2487
  %2592 = vmatmul.mubr.f32.gmra.mrb[0].mxu0 %v2484
  %v2593 = vpop.f32.mrb[0].mxu0
  %v2594 = vadd.f32 %v2525, %v2593
  %v2595 = vpop.f32.mrb[0].mxu0
  %2596 = vdwg.mxu0
  %vm2597 = vcmask 58368
  %2598 = vst.msk [vmem:[%s9] sm:$0x3] %vm2597, %v2594
  // Predicated region
  $region38: #{trajectory_predictor_forward.1} parent=0 // pred_check
    _
  $region39: #{trajectory_predictor_forward.1} parent=0 // pred_check_branch
    %2600 = sbr.rel (0) target = $region41
  $region40: #{trajectory_predictor_forward.1} parent=0 // pred_region
    _
  $region41: #{trajectory_predictor_forward.1} parent=0 // pred_fallthru
    _
  // Predicated region
  $region42: #{trajectory_predictor_forward.1} parent=0 // pred_check
    _
  $region43: #{trajectory_predictor_forward.1} parent=0 // pred_check_branch
    %2602 = sbr.rel (0) target = $region45
  $region44: #{trajectory_predictor_forward.1} parent=0 // pred_region
    _
  $region45: #{trajectory_predictor_forward.1} parent=0 // pred_fallthru
    _

</llo_original>
